<compile_context>
chip_gen: v7x
topology: tpu7x:2x2x1
jax: 0.10.0
libtpu: 0.0.40
codegen_flags: <defaults>
</compile_context>

<pallas_src>
import jax
import jax.numpy as jnp
from jax.experimental import pallas as pl
from jax.experimental.pallas import tpu as pltpu

_LANES = 128
_F32 = jnp.float32


# ----------------------------------------------------------------------------
# One-time weight packing (cache this across calls; it only depends on params).
# ----------------------------------------------------------------------------
def pack_controller_params(params):
  """Pack all weights into a single zero-padded (rows, 128) f32 VMEM slab.

  Row layout (each row is one weight *column*, transposed, zero-padded to 128):
    [ ciw^T | cow^T | crw^T | cb1^T | clw | cb2-onehot |
      piw^T | pow^T | pb1^T | plw  | pb2-onehot ]            (row-pad to x8)
  cb2 / pb2 are stored as one-hot rows (value in lane 0) so they fold into the
  cross-lane reduce instead of needing separate scalar reads.
  """
  def rowpad(m):
    m = jnp.asarray(m, _F32)
    return jnp.pad(m, ((0, 0), (0, _LANES - m.shape[1])))

  def onehot(v):
    return jnp.pad(jnp.asarray(v, _F32).reshape(1, 1), ((0, 0), (0, _LANES - 1)))

  rows = jnp.concatenate([
      rowpad(params['ciw'].T), rowpad(params['cow'].T), rowpad(params['crw'].T),
      rowpad(params['cb1'].T), rowpad(params['clw']), onehot(params['cb2']),
      rowpad(params['piw'].T), rowpad(params['pow'].T),
      rowpad(params['pb1'].T), rowpad(params['plw']), onehot(params['pb2']),
  ], axis=0)
  r = rows.shape[0]
  r_pad = ((r + 7) // 8) * 8
  return jnp.pad(rows, ((0, r_pad - r), (0, 0)))


# ----------------------------------------------------------------------------
# Kernel
# ----------------------------------------------------------------------------
def _make_kernel(T, d_ci, d_cr, d_co, d_pi, d_po):
  # Static row offsets into the weight slab (must match pack_controller_params).
  o_ciw = 0
  o_cow = o_ciw + d_ci
  o_crw = o_cow + d_co
  o_cb1 = o_crw + d_cr
  o_clw = o_cb1 + 1
  o_cb2 = o_clw + 1
  o_piw = o_cb2 + 1
  o_pow = o_piw + d_pi + 1
  o_pb1 = o_pow + d_po
  o_plw = o_pb1 + 1
  o_pb2 = o_plw + 1

  # Static offsets into the packed per-call SMEM vector.
  s_ref = 0
  s_ci = s_ref + T
  s_cr = s_ci + d_ci
  s_co = s_cr + d_cr
  s_pi = s_co + d_co
  s_po = s_pi + d_pi

  def kernel(slab_ref, sv_ref, out_ref, states_ref):
    # ---- prologue: one VMEM load, value-level row slices (off the chain) ----
    slab = slab_ref[...]
    row = lambda i: slab[i:i + 1, :]

    ciw_rows = [row(o_ciw + k) for k in range(d_ci)]
    cow_rows = [row(o_cow + k) for k in range(d_co)]
    crw_rows = [row(o_crw + k) for k in range(d_cr)]
    cb1_row, clw_row, cb2_oh = row(o_cb1), row(o_clw), row(o_cb2)
    piw_rows = [row(o_piw + k) for k in range(d_pi + 1)]
    pow_rows = [row(o_pow + k) for k in range(d_po)]
    pb1_row, plw_row, pb2_oh = row(o_pb1), row(o_plw), row(o_pb2)

    # Initial TDL taps are SMEM scalars; produced taps are lane-broadcast vregs.
    # The per-step TDL "shift" is a compile-time list rotation (zero runtime ops).
    ci_taps = [sv_ref[0, s_ci + k] for k in range(d_ci)]
    co_taps = [sv_ref[0, s_co + k] for k in range(d_co)]
    pi_taps = [sv_ref[0, s_pi + k] for k in range(d_pi)]
    po_taps = [sv_ref[0, s_po + k] for k in range(d_po)]

    a2_hist, a4_hist = [], []

    # ---- fully unrolled serial recurrence (T is small and static) ----
    for t in range(T):
      # Controller network.
      # Off-chain base: cb1 + crw@crtdl(t) (SMEM scalars * crw rows -> pure VPU,
      # no MXU) plus all k>=1 tap MACs (those taps are >= 2 steps old). Nothing
      # below depends on step t-1 until the two k=0 MACs, so the scheduler
      # overlaps this base with the previous step's tanh/reduce.
      n1 = cb1_row
      for k in range(d_cr):
        idx = t - 1 - k
        v = sv_ref[0, s_ref + idx] if idx >= 0 else sv_ref[0, s_cr + (k - t)]
        n1 = n1 + v * crw_rows[k]
      for k in range(1, d_ci):
        n1 = n1 + ci_taps[k] * ciw_rows[k]
      for k in range(1, d_co):
        n1 = n1 + co_taps[k] * cow_rows[k]
      # Chain-critical: only these depend on a2(t-1) / a4(t-1).
      if d_ci:
        n1 = n1 + ci_taps[0] * ciw_rows[0]
      if d_co:
        n1 = n1 + co_taps[0] * cow_rows[0]
      a1 = jnp.tanh(n1)
      # cb2 folded into the reduce via its one-hot row (a1's pad lanes are 0).
      a2_sc = jnp.sum(clw_row * a1 + cb2_oh)
      a2 = jnp.full((1, _LANES), a2_sc, dtype=_F32)   # one explicit broadcast

      # Plant network (pdelay = [pitdl ; a2] -> a2 multiplies the last piw column).
      n3 = pb1_row
      for k in range(1, d_pi):
        n3 = n3 + pi_taps[k] * piw_rows[k]
      for k in range(1, d_po):
        n3 = n3 + po_taps[k] * pow_rows[k]
      if d_pi:
        n3 = n3 + pi_taps[0] * piw_rows[0]
      if d_po:
        n3 = n3 + po_taps[0] * pow_rows[0]
      n3 = n3 + a2 * piw_rows[d_pi]                   # single add behind a2(t)
      a3 = jnp.tanh(n3)
      a4_sc = jnp.sum(plw_row * a3 + pb2_oh)
      a4 = jnp.full((1, _LANES), a4_sc, dtype=_F32)   # one explicit broadcast

      a2_hist.append(a2_sc)
      a4_hist.append(a4_sc)

      # Newest-first TDL updates (compile-time rotation only).
      ci_taps = [a2] + ci_taps[:-1]
      co_taps = [a4] + co_taps[:-1]
      pi_taps = [a2] + pi_taps[:-1]
      po_taps = [a4] + po_taps[:-1]

    # ---- epilogue: batched scalar SMEM stores, all off the serial chain ----
    for t in range(T):
      out_ref[0, t] = a4_hist[t]

    def final_tap(hist, init_off, k):
      idx = T - 1 - k
      return hist[idx] if idx >= 0 else sv_ref[0, init_off + (k - T)]

    o = 0
    for k in range(d_ci):                              # final citdl (from a2 history)
      states_ref[0, o + k] = final_tap(a2_hist, s_ci, k)
    o += d_ci
    for k in range(d_cr):                              # final crtdl (pure reference shift)
      idx = T - 1 - k
      states_ref[0, o + k] = (sv_ref[0, s_ref + idx] if idx >= 0
                              else sv_ref[0, s_cr + (k - T)])
    o += d_cr
    for k in range(d_co):                              # final cotdl (from a4 history)
      states_ref[0, o + k] = final_tap(a4_hist, s_co, k)
    o += d_co
    for k in range(d_pi):                              # final pitdl (from a2 history)
      states_ref[0, o + k] = final_tap(a2_hist, s_pi, k)
    o += d_pi
    for k in range(d_po):                              # final potdl (from a4 history)
      states_ref[0, o + k] = final_tap(a4_hist, s_po, k)

  return kernel


# ----------------------------------------------------------------------------
# Wrapper
# ----------------------------------------------------------------------------
def controller_forward(reference, citdl, crtdl, cotdl, pitdl, potdl,
                       params=None, packed_weights=None):
  """Whole-T-step MRAC rollout in a single pallas_call (2 inputs, 2 outputs).

  `packed_weights` (from pack_controller_params) depends only on params:
  compute it once and pass it on every call to avoid per-call weight plumbing.
  """
  if packed_weights is None:
    packed_weights = pack_controller_params(params)

  reference = jnp.asarray(reference, _F32)
  T = reference.shape[1]
  d_ci, d_cr, d_co = citdl.shape[0], crtdl.shape[0], cotdl.shape[0]
  d_pi, d_po = pitdl.shape[0], potdl.shape[0]
  d_total = d_ci + d_cr + d_co + d_pi + d_po

  # Single packed per-call SMEM vector: [reference | citdl | crtdl | cotdl | pitdl | potdl].
  sv = jnp.concatenate([
      reference.reshape(-1),
      jnp.asarray(citdl, _F32).reshape(-1), jnp.asarray(crtdl, _F32).reshape(-1),
      jnp.asarray(cotdl, _F32).reshape(-1), jnp.asarray(pitdl, _F32).reshape(-1),
      jnp.asarray(potdl, _F32).reshape(-1)]).reshape(1, -1)

  kernel = _make_kernel(T, d_ci, d_cr, d_co, d_pi, d_po)
  vmem = pl.BlockSpec(memory_space=pltpu.MemorySpace.VMEM)
  smem = pl.BlockSpec(memory_space=pltpu.MemorySpace.SMEM)

  out_seq, states = pl.pallas_call(
      kernel,
      out_shape=(jax.ShapeDtypeStruct((1, T), _F32),          # output sequence
                 jax.ShapeDtypeStruct((1, d_total), _F32)),    # packed final TDLs
      in_specs=[vmem, smem],
      out_specs=(smem, smem),
  )(packed_weights, sv)

  # Unpack final TDL states back to the PyTorch (d, 1) column shapes.
  o = 0
  def take(d):
    nonlocal o
    s = states[0, o:o + d].reshape(d, 1)
    o += d
    return s
  citdl_o = take(d_ci)
  crtdl_o = take(d_cr)
  cotdl_o = take(d_co)
  pitdl_o = take(d_pi)
  potdl_o = take(d_po)
  return out_seq, citdl_o, crtdl_o, cotdl_o, pitdl_o, potdl_o


# ----------------------------------------------------------------------------
# Pure-JAX reference (mirrors the PyTorch cell loop)
# ----------------------------------------------------------------------------
def controller_forward_ref(reference, citdl, crtdl, cotdl, pitdl, potdl, p):
  outs = []
  for t in range(reference.shape[1]):
    ref_t = reference[:, t:t + 1]
    n1 = p['ciw'] @ citdl + p['crw'] @ crtdl + p['cow'] @ cotdl + p['cb1']
    a1 = jnp.tanh(n1)
    a2 = p['clw'] @ a1 + p['cb2']
    pdelay = jnp.concatenate([pitdl, a2], axis=0)
    n3 = p['piw'] @ pdelay + p['pow'] @ potdl + p['pb1']
    a3 = jnp.tanh(n3)
    a4 = p['plw'] @ a3 + p['pb2']
    citdl = jnp.concatenate([a2, citdl[:-1]], axis=0)
    crtdl = jnp.concatenate([ref_t, crtdl[:-1]], axis=0)
    cotdl = jnp.concatenate([a4, cotdl[:-1]], axis=0)
    pitdl = jnp.concatenate([a2, pitdl[:-1]], axis=0)
    potdl = jnp.concatenate([a4, potdl[:-1]], axis=0)
    outs.append(a4)
  return (jnp.concatenate(outs, axis=1), citdl, crtdl, cotdl, pitdl, potdl)


if __name__ == "__main__":
  T = 8                                   # sequence length
  Hc, Hp = 8, 8                           # controller / plant hidden sizes
  d_ci, d_cr, d_co = 3, 4, 3              # controller input / reference / output delays
  d_pi, d_po = 3, 2                       # plant input / output delays

  ks = jax.random.split(jax.random.PRNGKey(0), 20)

  def rnd(k, shape, scale=0.01):
    return (scale * jax.random.normal(k, shape)).astype(_F32)

  params = {
      'ciw': rnd(ks[0], (Hc, d_ci)),
      'crw': rnd(ks[1], (Hc, d_cr)),
      'cow': rnd(ks[2], (Hc, d_co)),
      'cb1': rnd(ks[3], (Hc, 1)),
      'clw': rnd(ks[4], (1, Hc)),
      'cb2': rnd(ks[5], (1, 1)),
      # "plant" weights come from configuration in the original; synthesized here.
      'piw': rnd(ks[6], (Hp, d_pi + 1)),
      'pow': rnd(ks[7], (Hp, d_po)),
      'pb1': rnd(ks[8], (Hp, 1)),
      'plw': rnd(ks[9], (1, Hp)),
      'pb2': rnd(ks[10], (1, 1)),
  }

  reference = jax.random.normal(ks[11], (1, T), dtype=_F32)
  citdl = rnd(ks[12], (d_ci, 1), scale=0.1)
  crtdl = rnd(ks[13], (d_cr, 1), scale=0.1)
  cotdl = rnd(ks[14], (d_co, 1), scale=0.1)
  pitdl = rnd(ks[15], (d_pi, 1), scale=0.1)
  potdl = rnd(ks[16], (d_po, 1), scale=0.1)

  # Pack the weights ONCE (cacheable across calls); per-call work is minimal.
  packed = jax.block_until_ready(pack_controller_params(params))

  fwd = jax.jit(lambda ref, ci, cr, co, pi, po, pw: controller_forward(
      ref, ci, cr, co, pi, po, packed_weights=pw))

  got = fwd(reference, citdl, crtdl, cotdl, pitdl, potdl, packed)
  got = jax.block_until_ready(got)

  want = controller_forward_ref(reference, citdl, crtdl, cotdl, pitdl, potdl, params)

  names = ["output", "citdl", "crtdl", "cotdl", "pitdl", "potdl"]
  for name, a, b in zip(names, got, want):
    assert a.shape == b.shape, (name, a.shape, b.shape)
    assert jnp.allclose(a, b, atol=1e-4, rtol=1e-3), (name, a, b)

  print("KERNEL_OK")
</pallas_src>

<mosaic_0001>
module attributes {stable_mosaic.version = 11 : i64} {
  func.func @kernel(%arg0: memref<24x128xf32, #tpu.memory_space<vmem>>, %arg1: memref<1x23xf32, #tpu.memory_space<smem>>, %arg2: memref<1x8xf32, #tpu.memory_space<smem>>, %arg3: memref<1x15xf32, #tpu.memory_space<smem>>) attributes {dimension_semantics = [], scalar_prefetch = 0 : i64, scratch_operands = 0 : i64, tpu.core_type = #tpu.core_type<tc>} {
    %c0 = arith.constant 0 : index
    %c0_0 = arith.constant 0 : index
    %0 = vector.load %arg0[%c0, %c0_0] : memref<24x128xf32, #tpu.memory_space<vmem>>, vector<24x128xf32>
    %1 = vector.extract_strided_slice %0 {offsets = [0, 0], sizes = [1, 128], strides = [1, 1]} : vector<24x128xf32> to vector<1x128xf32>
    %2 = vector.extract_strided_slice %0 {offsets = [1, 0], sizes = [1, 128], strides = [1, 1]} : vector<24x128xf32> to vector<1x128xf32>
    %3 = vector.extract_strided_slice %0 {offsets = [2, 0], sizes = [1, 128], strides = [1, 1]} : vector<24x128xf32> to vector<1x128xf32>
    %4 = vector.extract_strided_slice %0 {offsets = [3, 0], sizes = [1, 128], strides = [1, 1]} : vector<24x128xf32> to vector<1x128xf32>
    %5 = vector.extract_strided_slice %0 {offsets = [4, 0], sizes = [1, 128], strides = [1, 1]} : vector<24x128xf32> to vector<1x128xf32>
    %6 = vector.extract_strided_slice %0 {offsets = [5, 0], sizes = [1, 128], strides = [1, 1]} : vector<24x128xf32> to vector<1x128xf32>
    %7 = vector.extract_strided_slice %0 {offsets = [6, 0], sizes = [1, 128], strides = [1, 1]} : vector<24x128xf32> to vector<1x128xf32>
    %8 = vector.extract_strided_slice %0 {offsets = [7, 0], sizes = [1, 128], strides = [1, 1]} : vector<24x128xf32> to vector<1x128xf32>
    %9 = vector.extract_strided_slice %0 {offsets = [8, 0], sizes = [1, 128], strides = [1, 1]} : vector<24x128xf32> to vector<1x128xf32>
    %10 = vector.extract_strided_slice %0 {offsets = [9, 0], sizes = [1, 128], strides = [1, 1]} : vector<24x128xf32> to vector<1x128xf32>
    %11 = vector.extract_strided_slice %0 {offsets = [10, 0], sizes = [1, 128], strides = [1, 1]} : vector<24x128xf32> to vector<1x128xf32>
    %12 = vector.extract_strided_slice %0 {offsets = [11, 0], sizes = [1, 128], strides = [1, 1]} : vector<24x128xf32> to vector<1x128xf32>
    %13 = vector.extract_strided_slice %0 {offsets = [12, 0], sizes = [1, 128], strides = [1, 1]} : vector<24x128xf32> to vector<1x128xf32>
    %14 = vector.extract_strided_slice %0 {offsets = [13, 0], sizes = [1, 128], strides = [1, 1]} : vector<24x128xf32> to vector<1x128xf32>
    %15 = vector.extract_strided_slice %0 {offsets = [14, 0], sizes = [1, 128], strides = [1, 1]} : vector<24x128xf32> to vector<1x128xf32>
    %16 = vector.extract_strided_slice %0 {offsets = [15, 0], sizes = [1, 128], strides = [1, 1]} : vector<24x128xf32> to vector<1x128xf32>
    %17 = vector.extract_strided_slice %0 {offsets = [16, 0], sizes = [1, 128], strides = [1, 1]} : vector<24x128xf32> to vector<1x128xf32>
    %18 = vector.extract_strided_slice %0 {offsets = [17, 0], sizes = [1, 128], strides = [1, 1]} : vector<24x128xf32> to vector<1x128xf32>
    %19 = vector.extract_strided_slice %0 {offsets = [18, 0], sizes = [1, 128], strides = [1, 1]} : vector<24x128xf32> to vector<1x128xf32>
    %20 = vector.extract_strided_slice %0 {offsets = [19, 0], sizes = [1, 128], strides = [1, 1]} : vector<24x128xf32> to vector<1x128xf32>
    %21 = vector.extract_strided_slice %0 {offsets = [20, 0], sizes = [1, 128], strides = [1, 1]} : vector<24x128xf32> to vector<1x128xf32>
    %22 = vector.extract_strided_slice %0 {offsets = [21, 0], sizes = [1, 128], strides = [1, 1]} : vector<24x128xf32> to vector<1x128xf32>
    %c0_1 = arith.constant 0 : index
    %c8 = arith.constant 8 : index
    %23 = memref.load %arg1[%c0_1, %c8] : memref<1x23xf32, #tpu.memory_space<smem>>
    %c0_2 = arith.constant 0 : index
    %c9 = arith.constant 9 : index
    %24 = memref.load %arg1[%c0_2, %c9] : memref<1x23xf32, #tpu.memory_space<smem>>
    %c0_3 = arith.constant 0 : index
    %c10 = arith.constant 10 : index
    %25 = memref.load %arg1[%c0_3, %c10] : memref<1x23xf32, #tpu.memory_space<smem>>
    %c0_4 = arith.constant 0 : index
    %c15 = arith.constant 15 : index
    %26 = memref.load %arg1[%c0_4, %c15] : memref<1x23xf32, #tpu.memory_space<smem>>
    %c0_5 = arith.constant 0 : index
    %c16 = arith.constant 16 : index
    %27 = memref.load %arg1[%c0_5, %c16] : memref<1x23xf32, #tpu.memory_space<smem>>
    %c0_6 = arith.constant 0 : index
    %c17 = arith.constant 17 : index
    %28 = memref.load %arg1[%c0_6, %c17] : memref<1x23xf32, #tpu.memory_space<smem>>
    %c0_7 = arith.constant 0 : index
    %c18 = arith.constant 18 : index
    %29 = memref.load %arg1[%c0_7, %c18] : memref<1x23xf32, #tpu.memory_space<smem>>
    %c0_8 = arith.constant 0 : index
    %c19 = arith.constant 19 : index
    %30 = memref.load %arg1[%c0_8, %c19] : memref<1x23xf32, #tpu.memory_space<smem>>
    %c0_9 = arith.constant 0 : index
    %c20 = arith.constant 20 : index
    %31 = memref.load %arg1[%c0_9, %c20] : memref<1x23xf32, #tpu.memory_space<smem>>
    %c0_10 = arith.constant 0 : index
    %c21 = arith.constant 21 : index
    %32 = memref.load %arg1[%c0_10, %c21] : memref<1x23xf32, #tpu.memory_space<smem>>
    %c0_11 = arith.constant 0 : index
    %c22 = arith.constant 22 : index
    %33 = memref.load %arg1[%c0_11, %c22] : memref<1x23xf32, #tpu.memory_space<smem>>
    %c0_12 = arith.constant 0 : index
    %c11 = arith.constant 11 : index
    %34 = memref.load %arg1[%c0_12, %c11] : memref<1x23xf32, #tpu.memory_space<smem>>
    %35 = vector.broadcast %34 : f32 to vector<1x128xf32>
    %36 = arith.mulf %35, %7 : vector<1x128xf32>
    %37 = arith.addf %11, %36 : vector<1x128xf32>
    %c0_13 = arith.constant 0 : index
    %c12 = arith.constant 12 : index
    %38 = memref.load %arg1[%c0_13, %c12] : memref<1x23xf32, #tpu.memory_space<smem>>
    %39 = vector.broadcast %38 : f32 to vector<1x128xf32>
    %40 = arith.mulf %39, %8 : vector<1x128xf32>
    %41 = arith.addf %37, %40 : vector<1x128xf32>
    %c0_14 = arith.constant 0 : index
    %c13 = arith.constant 13 : index
    %42 = memref.load %arg1[%c0_14, %c13] : memref<1x23xf32, #tpu.memory_space<smem>>
    %43 = vector.broadcast %42 : f32 to vector<1x128xf32>
    %44 = arith.mulf %43, %9 : vector<1x128xf32>
    %45 = arith.addf %41, %44 : vector<1x128xf32>
    %c0_15 = arith.constant 0 : index
    %c14 = arith.constant 14 : index
    %46 = memref.load %arg1[%c0_15, %c14] : memref<1x23xf32, #tpu.memory_space<smem>>
    %47 = vector.broadcast %46 : f32 to vector<1x128xf32>
    %48 = arith.mulf %47, %10 : vector<1x128xf32>
    %49 = arith.addf %45, %48 : vector<1x128xf32>
    %50 = vector.broadcast %24 : f32 to vector<1x128xf32>
    %51 = arith.mulf %50, %2 : vector<1x128xf32>
    %52 = arith.addf %49, %51 : vector<1x128xf32>
    %53 = vector.broadcast %25 : f32 to vector<1x128xf32>
    %54 = arith.mulf %53, %3 : vector<1x128xf32>
    %55 = arith.addf %52, %54 : vector<1x128xf32>
    %56 = vector.broadcast %27 : f32 to vector<1x128xf32>
    %57 = arith.mulf %56, %5 : vector<1x128xf32>
    %58 = arith.addf %55, %57 : vector<1x128xf32>
    %59 = vector.broadcast %28 : f32 to vector<1x128xf32>
    %60 = arith.mulf %59, %6 : vector<1x128xf32>
    %61 = arith.addf %58, %60 : vector<1x128xf32>
    %62 = vector.broadcast %23 : f32 to vector<1x128xf32>
    %63 = arith.mulf %62, %1 : vector<1x128xf32>
    %64 = arith.addf %61, %63 : vector<1x128xf32>
    %65 = vector.broadcast %26 : f32 to vector<1x128xf32>
    %66 = arith.mulf %65, %4 : vector<1x128xf32>
    %67 = arith.addf %64, %66 : vector<1x128xf32>
    %68 = math.tanh %67 : vector<1x128xf32>
    %69 = arith.mulf %12, %68 : vector<1x128xf32>
    %70 = arith.addf %69, %13 : vector<1x128xf32>
    %71 = vector.shape_cast %70 : vector<1x128xf32> to vector<1x1x128xf32>
    %cst = arith.constant dense<0.000000e+00> : vector<1xf32>
    %72 = vector.multi_reduction <add>, %71, %cst [1, 2] : vector<1x1x128xf32> to vector<1xf32>
    %73 = vector.shape_cast %72 : vector<1xf32> to vector<1x1x1xf32>
    %74 = vector.extract %73[0, 0, 0] : f32 from vector<1x1x1xf32>
    %75 = vector.broadcast %74 : f32 to vector<1x128xf32>
    %76 = vector.broadcast %30 : f32 to vector<1x128xf32>
    %77 = arith.mulf %76, %15 : vector<1x128xf32>
    %78 = arith.addf %20, %77 : vector<1x128xf32>
    %79 = vector.broadcast %31 : f32 to vector<1x128xf32>
    %80 = arith.mulf %79, %16 : vector<1x128xf32>
    %81 = arith.addf %78, %80 : vector<1x128xf32>
    %82 = vector.broadcast %33 : f32 to vector<1x128xf32>
    %83 = arith.mulf %82, %19 : vector<1x128xf32>
    %84 = arith.addf %81, %83 : vector<1x128xf32>
    %85 = vector.broadcast %29 : f32 to vector<1x128xf32>
    %86 = arith.mulf %85, %14 : vector<1x128xf32>
    %87 = arith.addf %84, %86 : vector<1x128xf32>
    %88 = vector.broadcast %32 : f32 to vector<1x128xf32>
    %89 = arith.mulf %88, %18 : vector<1x128xf32>
    %90 = arith.addf %87, %89 : vector<1x128xf32>
    %91 = arith.mulf %75, %17 : vector<1x128xf32>
    %92 = arith.addf %90, %91 : vector<1x128xf32>
    %93 = math.tanh %92 : vector<1x128xf32>
    %94 = arith.mulf %21, %93 : vector<1x128xf32>
    %95 = arith.addf %94, %22 : vector<1x128xf32>
    %96 = vector.shape_cast %95 : vector<1x128xf32> to vector<1x1x128xf32>
    %cst_16 = arith.constant dense<0.000000e+00> : vector<1xf32>
    %97 = vector.multi_reduction <add>, %96, %cst_16 [1, 2] : vector<1x1x128xf32> to vector<1xf32>
    %98 = vector.shape_cast %97 : vector<1xf32> to vector<1x1x1xf32>
    %99 = vector.extract %98[0, 0, 0] : f32 from vector<1x1x1xf32>
    %100 = vector.broadcast %99 : f32 to vector<1x128xf32>
    %c0_17 = arith.constant 0 : index
    %c0_18 = arith.constant 0 : index
    %101 = memref.load %arg1[%c0_17, %c0_18] : memref<1x23xf32, #tpu.memory_space<smem>>
    %102 = vector.broadcast %101 : f32 to vector<1x128xf32>
    %103 = arith.mulf %102, %7 : vector<1x128xf32>
    %104 = arith.addf %11, %103 : vector<1x128xf32>
    %c0_19 = arith.constant 0 : index
    %c11_20 = arith.constant 11 : index
    %105 = memref.load %arg1[%c0_19, %c11_20] : memref<1x23xf32, #tpu.memory_space<smem>>
    %106 = vector.broadcast %105 : f32 to vector<1x128xf32>
    %107 = arith.mulf %106, %8 : vector<1x128xf32>
    %108 = arith.addf %104, %107 : vector<1x128xf32>
    %c0_21 = arith.constant 0 : index
    %c12_22 = arith.constant 12 : index
    %109 = memref.load %arg1[%c0_21, %c12_22] : memref<1x23xf32, #tpu.memory_space<smem>>
    %110 = vector.broadcast %109 : f32 to vector<1x128xf32>
    %111 = arith.mulf %110, %9 : vector<1x128xf32>
    %112 = arith.addf %108, %111 : vector<1x128xf32>
    %c0_23 = arith.constant 0 : index
    %c13_24 = arith.constant 13 : index
    %113 = memref.load %arg1[%c0_23, %c13_24] : memref<1x23xf32, #tpu.memory_space<smem>>
    %114 = vector.broadcast %113 : f32 to vector<1x128xf32>
    %115 = arith.mulf %114, %10 : vector<1x128xf32>
    %116 = arith.addf %112, %115 : vector<1x128xf32>
    %117 = vector.broadcast %23 : f32 to vector<1x128xf32>
    %118 = arith.mulf %117, %2 : vector<1x128xf32>
    %119 = arith.addf %116, %118 : vector<1x128xf32>
    %120 = vector.broadcast %24 : f32 to vector<1x128xf32>
    %121 = arith.mulf %120, %3 : vector<1x128xf32>
    %122 = arith.addf %119, %121 : vector<1x128xf32>
    %123 = vector.broadcast %26 : f32 to vector<1x128xf32>
    %124 = arith.mulf %123, %5 : vector<1x128xf32>
    %125 = arith.addf %122, %124 : vector<1x128xf32>
    %126 = vector.broadcast %27 : f32 to vector<1x128xf32>
    %127 = arith.mulf %126, %6 : vector<1x128xf32>
    %128 = arith.addf %125, %127 : vector<1x128xf32>
    %129 = arith.mulf %75, %1 : vector<1x128xf32>
    %130 = arith.addf %128, %129 : vector<1x128xf32>
    %131 = arith.mulf %100, %4 : vector<1x128xf32>
    %132 = arith.addf %130, %131 : vector<1x128xf32>
    %133 = math.tanh %132 : vector<1x128xf32>
    %134 = arith.mulf %12, %133 : vector<1x128xf32>
    %135 = arith.addf %134, %13 : vector<1x128xf32>
    %136 = vector.shape_cast %135 : vector<1x128xf32> to vector<1x1x128xf32>
    %cst_25 = arith.constant dense<0.000000e+00> : vector<1xf32>
    %137 = vector.multi_reduction <add>, %136, %cst_25 [1, 2] : vector<1x1x128xf32> to vector<1xf32>
    %138 = vector.shape_cast %137 : vector<1xf32> to vector<1x1x1xf32>
    %139 = vector.extract %138[0, 0, 0] : f32 from vector<1x1x1xf32>
    %140 = vector.broadcast %139 : f32 to vector<1x128xf32>
    %141 = vector.broadcast %29 : f32 to vector<1x128xf32>
    %142 = arith.mulf %141, %15 : vector<1x128xf32>
    %143 = arith.addf %20, %142 : vector<1x128xf32>
    %144 = vector.broadcast %30 : f32 to vector<1x128xf32>
    %145 = arith.mulf %144, %16 : vector<1x128xf32>
    %146 = arith.addf %143, %145 : vector<1x128xf32>
    %147 = vector.broadcast %32 : f32 to vector<1x128xf32>
    %148 = arith.mulf %147, %19 : vector<1x128xf32>
    %149 = arith.addf %146, %148 : vector<1x128xf32>
    %150 = arith.mulf %75, %14 : vector<1x128xf32>
    %151 = arith.addf %149, %150 : vector<1x128xf32>
    %152 = arith.mulf %100, %18 : vector<1x128xf32>
    %153 = arith.addf %151, %152 : vector<1x128xf32>
    %154 = arith.mulf %140, %17 : vector<1x128xf32>
    %155 = arith.addf %153, %154 : vector<1x128xf32>
    %156 = math.tanh %155 : vector<1x128xf32>
    %157 = arith.mulf %21, %156 : vector<1x128xf32>
    %158 = arith.addf %157, %22 : vector<1x128xf32>
    %159 = vector.shape_cast %158 : vector<1x128xf32> to vector<1x1x128xf32>
    %cst_26 = arith.constant dense<0.000000e+00> : vector<1xf32>
    %160 = vector.multi_reduction <add>, %159, %cst_26 [1, 2] : vector<1x1x128xf32> to vector<1xf32>
    %161 = vector.shape_cast %160 : vector<1xf32> to vector<1x1x1xf32>
    %162 = vector.extract %161[0, 0, 0] : f32 from vector<1x1x1xf32>
    %163 = vector.broadcast %162 : f32 to vector<1x128xf32>
    %c0_27 = arith.constant 0 : index
    %c1 = arith.constant 1 : index
    %164 = memref.load %arg1[%c0_27, %c1] : memref<1x23xf32, #tpu.memory_space<smem>>
    %165 = vector.broadcast %164 : f32 to vector<1x128xf32>
    %166 = arith.mulf %165, %7 : vector<1x128xf32>
    %167 = arith.addf %11, %166 : vector<1x128xf32>
    %c0_28 = arith.constant 0 : index
    %c0_29 = arith.constant 0 : index
    %168 = memref.load %arg1[%c0_28, %c0_29] : memref<1x23xf32, #tpu.memory_space<smem>>
    %169 = vector.broadcast %168 : f32 to vector<1x128xf32>
    %170 = arith.mulf %169, %8 : vector<1x128xf32>
    %171 = arith.addf %167, %170 : vector<1x128xf32>
    %c0_30 = arith.constant 0 : index
    %c11_31 = arith.constant 11 : index
    %172 = memref.load %arg1[%c0_30, %c11_31] : memref<1x23xf32, #tpu.memory_space<smem>>
    %173 = vector.broadcast %172 : f32 to vector<1x128xf32>
    %174 = arith.mulf %173, %9 : vector<1x128xf32>
    %175 = arith.addf %171, %174 : vector<1x128xf32>
    %c0_32 = arith.constant 0 : index
    %c12_33 = arith.constant 12 : index
    %176 = memref.load %arg1[%c0_32, %c12_33] : memref<1x23xf32, #tpu.memory_space<smem>>
    %177 = vector.broadcast %176 : f32 to vector<1x128xf32>
    %178 = arith.mulf %177, %10 : vector<1x128xf32>
    %179 = arith.addf %175, %178 : vector<1x128xf32>
    %180 = arith.mulf %75, %2 : vector<1x128xf32>
    %181 = arith.addf %179, %180 : vector<1x128xf32>
    %182 = vector.broadcast %23 : f32 to vector<1x128xf32>
    %183 = arith.mulf %182, %3 : vector<1x128xf32>
    %184 = arith.addf %181, %183 : vector<1x128xf32>
    %185 = arith.mulf %100, %5 : vector<1x128xf32>
    %186 = arith.addf %184, %185 : vector<1x128xf32>
    %187 = vector.broadcast %26 : f32 to vector<1x128xf32>
    %188 = arith.mulf %187, %6 : vector<1x128xf32>
    %189 = arith.addf %186, %188 : vector<1x128xf32>
    %190 = arith.mulf %140, %1 : vector<1x128xf32>
    %191 = arith.addf %189, %190 : vector<1x128xf32>
    %192 = arith.mulf %163, %4 : vector<1x128xf32>
    %193 = arith.addf %191, %192 : vector<1x128xf32>
    %194 = math.tanh %193 : vector<1x128xf32>
    %195 = arith.mulf %12, %194 : vector<1x128xf32>
    %196 = arith.addf %195, %13 : vector<1x128xf32>
    %197 = vector.shape_cast %196 : vector<1x128xf32> to vector<1x1x128xf32>
    %cst_34 = arith.constant dense<0.000000e+00> : vector<1xf32>
    %198 = vector.multi_reduction <add>, %197, %cst_34 [1, 2] : vector<1x1x128xf32> to vector<1xf32>
    %199 = vector.shape_cast %198 : vector<1xf32> to vector<1x1x1xf32>
    %200 = vector.extract %199[0, 0, 0] : f32 from vector<1x1x1xf32>
    %201 = vector.broadcast %200 : f32 to vector<1x128xf32>
    %202 = arith.mulf %75, %15 : vector<1x128xf32>
    %203 = arith.addf %20, %202 : vector<1x128xf32>
    %204 = vector.broadcast %29 : f32 to vector<1x128xf32>
    %205 = arith.mulf %204, %16 : vector<1x128xf32>
    %206 = arith.addf %203, %205 : vector<1x128xf32>
    %207 = arith.mulf %100, %19 : vector<1x128xf32>
    %208 = arith.addf %206, %207 : vector<1x128xf32>
    %209 = arith.mulf %140, %14 : vector<1x128xf32>
    %210 = arith.addf %208, %209 : vector<1x128xf32>
    %211 = arith.mulf %163, %18 : vector<1x128xf32>
    %212 = arith.addf %210, %211 : vector<1x128xf32>
    %213 = arith.mulf %201, %17 : vector<1x128xf32>
    %214 = arith.addf %212, %213 : vector<1x128xf32>
    %215 = math.tanh %214 : vector<1x128xf32>
    %216 = arith.mulf %21, %215 : vector<1x128xf32>
    %217 = arith.addf %216, %22 : vector<1x128xf32>
    %218 = vector.shape_cast %217 : vector<1x128xf32> to vector<1x1x128xf32>
    %cst_35 = arith.constant dense<0.000000e+00> : vector<1xf32>
    %219 = vector.multi_reduction <add>, %218, %cst_35 [1, 2] : vector<1x1x128xf32> to vector<1xf32>
    %220 = vector.shape_cast %219 : vector<1xf32> to vector<1x1x1xf32>
    %221 = vector.extract %220[0, 0, 0] : f32 from vector<1x1x1xf32>
    %222 = vector.broadcast %221 : f32 to vector<1x128xf32>
    %c0_36 = arith.constant 0 : index
    %c2 = arith.constant 2 : index
    %223 = memref.load %arg1[%c0_36, %c2] : memref<1x23xf32, #tpu.memory_space<smem>>
    %224 = vector.broadcast %223 : f32 to vector<1x128xf32>
    %225 = arith.mulf %224, %7 : vector<1x128xf32>
    %226 = arith.addf %11, %225 : vector<1x128xf32>
    %c0_37 = arith.constant 0 : index
    %c1_38 = arith.constant 1 : index
    %227 = memref.load %arg1[%c0_37, %c1_38] : memref<1x23xf32, #tpu.memory_space<smem>>
    %228 = vector.broadcast %227 : f32 to vector<1x128xf32>
    %229 = arith.mulf %228, %8 : vector<1x128xf32>
    %230 = arith.addf %226, %229 : vector<1x128xf32>
    %c0_39 = arith.constant 0 : index
    %c0_40 = arith.constant 0 : index
    %231 = memref.load %arg1[%c0_39, %c0_40] : memref<1x23xf32, #tpu.memory_space<smem>>
    %232 = vector.broadcast %231 : f32 to vector<1x128xf32>
    %233 = arith.mulf %232, %9 : vector<1x128xf32>
    %234 = arith.addf %230, %233 : vector<1x128xf32>
    %c0_41 = arith.constant 0 : index
    %c11_42 = arith.constant 11 : index
    %235 = memref.load %arg1[%c0_41, %c11_42] : memref<1x23xf32, #tpu.memory_space<smem>>
    %236 = vector.broadcast %235 : f32 to vector<1x128xf32>
    %237 = arith.mulf %236, %10 : vector<1x128xf32>
    %238 = arith.addf %234, %237 : vector<1x128xf32>
    %239 = arith.mulf %140, %2 : vector<1x128xf32>
    %240 = arith.addf %238, %239 : vector<1x128xf32>
    %241 = arith.mulf %75, %3 : vector<1x128xf32>
    %242 = arith.addf %240, %241 : vector<1x128xf32>
    %243 = arith.mulf %163, %5 : vector<1x128xf32>
    %244 = arith.addf %242, %243 : vector<1x128xf32>
    %245 = arith.mulf %100, %6 : vector<1x128xf32>
    %246 = arith.addf %244, %245 : vector<1x128xf32>
    %247 = arith.mulf %201, %1 : vector<1x128xf32>
    %248 = arith.addf %246, %247 : vector<1x128xf32>
    %249 = arith.mulf %222, %4 : vector<1x128xf32>
    %250 = arith.addf %248, %249 : vector<1x128xf32>
    %251 = math.tanh %250 : vector<1x128xf32>
    %252 = arith.mulf %12, %251 : vector<1x128xf32>
    %253 = arith.addf %252, %13 : vector<1x128xf32>
    %254 = vector.shape_cast %253 : vector<1x128xf32> to vector<1x1x128xf32>
    %cst_43 = arith.constant dense<0.000000e+00> : vector<1xf32>
    %255 = vector.multi_reduction <add>, %254, %cst_43 [1, 2] : vector<1x1x128xf32> to vector<1xf32>
    %256 = vector.shape_cast %255 : vector<1xf32> to vector<1x1x1xf32>
    %257 = vector.extract %256[0, 0, 0] : f32 from vector<1x1x1xf32>
    %258 = vector.broadcast %257 : f32 to vector<1x128xf32>
    %259 = arith.mulf %140, %15 : vector<1x128xf32>
    %260 = arith.addf %20, %259 : vector<1x128xf32>
    %261 = arith.mulf %75, %16 : vector<1x128xf32>
    %262 = arith.addf %260, %261 : vector<1x128xf32>
    %263 = arith.mulf %163, %19 : vector<1x128xf32>
    %264 = arith.addf %262, %263 : vector<1x128xf32>
    %265 = arith.mulf %201, %14 : vector<1x128xf32>
    %266 = arith.addf %264, %265 : vector<1x128xf32>
    %267 = arith.mulf %222, %18 : vector<1x128xf32>
    %268 = arith.addf %266, %267 : vector<1x128xf32>
    %269 = arith.mulf %258, %17 : vector<1x128xf32>
    %270 = arith.addf %268, %269 : vector<1x128xf32>
    %271 = math.tanh %270 : vector<1x128xf32>
    %272 = arith.mulf %21, %271 : vector<1x128xf32>
    %273 = arith.addf %272, %22 : vector<1x128xf32>
    %274 = vector.shape_cast %273 : vector<1x128xf32> to vector<1x1x128xf32>
    %cst_44 = arith.constant dense<0.000000e+00> : vector<1xf32>
    %275 = vector.multi_reduction <add>, %274, %cst_44 [1, 2] : vector<1x1x128xf32> to vector<1xf32>
    %276 = vector.shape_cast %275 : vector<1xf32> to vector<1x1x1xf32>
    %277 = vector.extract %276[0, 0, 0] : f32 from vector<1x1x1xf32>
    %278 = vector.broadcast %277 : f32 to vector<1x128xf32>
    %c0_45 = arith.constant 0 : index
    %c3 = arith.constant 3 : index
    %279 = memref.load %arg1[%c0_45, %c3] : memref<1x23xf32, #tpu.memory_space<smem>>
    %280 = vector.broadcast %279 : f32 to vector<1x128xf32>
    %281 = arith.mulf %280, %7 : vector<1x128xf32>
    %282 = arith.addf %11, %281 : vector<1x128xf32>
    %c0_46 = arith.constant 0 : index
    %c2_47 = arith.constant 2 : index
    %283 = memref.load %arg1[%c0_46, %c2_47] : memref<1x23xf32, #tpu.memory_space<smem>>
    %284 = vector.broadcast %283 : f32 to vector<1x128xf32>
    %285 = arith.mulf %284, %8 : vector<1x128xf32>
    %286 = arith.addf %282, %285 : vector<1x128xf32>
    %c0_48 = arith.constant 0 : index
    %c1_49 = arith.constant 1 : index
    %287 = memref.load %arg1[%c0_48, %c1_49] : memref<1x23xf32, #tpu.memory_space<smem>>
    %288 = vector.broadcast %287 : f32 to vector<1x128xf32>
    %289 = arith.mulf %288, %9 : vector<1x128xf32>
    %290 = arith.addf %286, %289 : vector<1x128xf32>
    %c0_50 = arith.constant 0 : index
    %c0_51 = arith.constant 0 : index
    %291 = memref.load %arg1[%c0_50, %c0_51] : memref<1x23xf32, #tpu.memory_space<smem>>
    %292 = vector.broadcast %291 : f32 to vector<1x128xf32>
    %293 = arith.mulf %292, %10 : vector<1x128xf32>
    %294 = arith.addf %290, %293 : vector<1x128xf32>
    %295 = arith.mulf %201, %2 : vector<1x128xf32>
    %296 = arith.addf %294, %295 : vector<1x128xf32>
    %297 = arith.mulf %140, %3 : vector<1x128xf32>
    %298 = arith.addf %296, %297 : vector<1x128xf32>
    %299 = arith.mulf %222, %5 : vector<1x128xf32>
    %300 = arith.addf %298, %299 : vector<1x128xf32>
    %301 = arith.mulf %163, %6 : vector<1x128xf32>
    %302 = arith.addf %300, %301 : vector<1x128xf32>
    %303 = arith.mulf %258, %1 : vector<1x128xf32>
    %304 = arith.addf %302, %303 : vector<1x128xf32>
    %305 = arith.mulf %278, %4 : vector<1x128xf32>
    %306 = arith.addf %304, %305 : vector<1x128xf32>
    %307 = math.tanh %306 : vector<1x128xf32>
    %308 = arith.mulf %12, %307 : vector<1x128xf32>
    %309 = arith.addf %308, %13 : vector<1x128xf32>
    %310 = vector.shape_cast %309 : vector<1x128xf32> to vector<1x1x128xf32>
    %cst_52 = arith.constant dense<0.000000e+00> : vector<1xf32>
    %311 = vector.multi_reduction <add>, %310, %cst_52 [1, 2] : vector<1x1x128xf32> to vector<1xf32>
    %312 = vector.shape_cast %311 : vector<1xf32> to vector<1x1x1xf32>
    %313 = vector.extract %312[0, 0, 0] : f32 from vector<1x1x1xf32>
    %314 = vector.broadcast %313 : f32 to vector<1x128xf32>
    %315 = arith.mulf %201, %15 : vector<1x128xf32>
    %316 = arith.addf %20, %315 : vector<1x128xf32>
    %317 = arith.mulf %140, %16 : vector<1x128xf32>
    %318 = arith.addf %316, %317 : vector<1x128xf32>
    %319 = arith.mulf %222, %19 : vector<1x128xf32>
    %320 = arith.addf %318, %319 : vector<1x128xf32>
    %321 = arith.mulf %258, %14 : vector<1x128xf32>
    %322 = arith.addf %320, %321 : vector<1x128xf32>
    %323 = arith.mulf %278, %18 : vector<1x128xf32>
    %324 = arith.addf %322, %323 : vector<1x128xf32>
    %325 = arith.mulf %314, %17 : vector<1x128xf32>
    %326 = arith.addf %324, %325 : vector<1x128xf32>
    %327 = math.tanh %326 : vector<1x128xf32>
    %328 = arith.mulf %21, %327 : vector<1x128xf32>
    %329 = arith.addf %328, %22 : vector<1x128xf32>
    %330 = vector.shape_cast %329 : vector<1x128xf32> to vector<1x1x128xf32>
    %cst_53 = arith.constant dense<0.000000e+00> : vector<1xf32>
    %331 = vector.multi_reduction <add>, %330, %cst_53 [1, 2] : vector<1x1x128xf32> to vector<1xf32>
    %332 = vector.shape_cast %331 : vector<1xf32> to vector<1x1x1xf32>
    %333 = vector.extract %332[0, 0, 0] : f32 from vector<1x1x1xf32>
    %334 = vector.broadcast %333 : f32 to vector<1x128xf32>
    %c0_54 = arith.constant 0 : index
    %c4 = arith.constant 4 : index
    %335 = memref.load %arg1[%c0_54, %c4] : memref<1x23xf32, #tpu.memory_space<smem>>
    %336 = vector.broadcast %335 : f32 to vector<1x128xf32>
    %337 = arith.mulf %336, %7 : vector<1x128xf32>
    %338 = arith.addf %11, %337 : vector<1x128xf32>
    %c0_55 = arith.constant 0 : index
    %c3_56 = arith.constant 3 : index
    %339 = memref.load %arg1[%c0_55, %c3_56] : memref<1x23xf32, #tpu.memory_space<smem>>
    %340 = vector.broadcast %339 : f32 to vector<1x128xf32>
    %341 = arith.mulf %340, %8 : vector<1x128xf32>
    %342 = arith.addf %338, %341 : vector<1x128xf32>
    %c0_57 = arith.constant 0 : index
    %c2_58 = arith.constant 2 : index
    %343 = memref.load %arg1[%c0_57, %c2_58] : memref<1x23xf32, #tpu.memory_space<smem>>
    %344 = vector.broadcast %343 : f32 to vector<1x128xf32>
    %345 = arith.mulf %344, %9 : vector<1x128xf32>
    %346 = arith.addf %342, %345 : vector<1x128xf32>
    %c0_59 = arith.constant 0 : index
    %c1_60 = arith.constant 1 : index
    %347 = memref.load %arg1[%c0_59, %c1_60] : memref<1x23xf32, #tpu.memory_space<smem>>
    %348 = vector.broadcast %347 : f32 to vector<1x128xf32>
    %349 = arith.mulf %348, %10 : vector<1x128xf32>
    %350 = arith.addf %346, %349 : vector<1x128xf32>
    %351 = arith.mulf %258, %2 : vector<1x128xf32>
    %352 = arith.addf %350, %351 : vector<1x128xf32>
    %353 = arith.mulf %201, %3 : vector<1x128xf32>
    %354 = arith.addf %352, %353 : vector<1x128xf32>
    %355 = arith.mulf %278, %5 : vector<1x128xf32>
    %356 = arith.addf %354, %355 : vector<1x128xf32>
    %357 = arith.mulf %222, %6 : vector<1x128xf32>
    %358 = arith.addf %356, %357 : vector<1x128xf32>
    %359 = arith.mulf %314, %1 : vector<1x128xf32>
    %360 = arith.addf %358, %359 : vector<1x128xf32>
    %361 = arith.mulf %334, %4 : vector<1x128xf32>
    %362 = arith.addf %360, %361 : vector<1x128xf32>
    %363 = math.tanh %362 : vector<1x128xf32>
    %364 = arith.mulf %12, %363 : vector<1x128xf32>
    %365 = arith.addf %364, %13 : vector<1x128xf32>
    %366 = vector.shape_cast %365 : vector<1x128xf32> to vector<1x1x128xf32>
    %cst_61 = arith.constant dense<0.000000e+00> : vector<1xf32>
    %367 = vector.multi_reduction <add>, %366, %cst_61 [1, 2] : vector<1x1x128xf32> to vector<1xf32>
    %368 = vector.shape_cast %367 : vector<1xf32> to vector<1x1x1xf32>
    %369 = vector.extract %368[0, 0, 0] : f32 from vector<1x1x1xf32>
    %370 = vector.broadcast %369 : f32 to vector<1x128xf32>
    %371 = arith.mulf %258, %15 : vector<1x128xf32>
    %372 = arith.addf %20, %371 : vector<1x128xf32>
    %373 = arith.mulf %201, %16 : vector<1x128xf32>
    %374 = arith.addf %372, %373 : vector<1x128xf32>
    %375 = arith.mulf %278, %19 : vector<1x128xf32>
    %376 = arith.addf %374, %375 : vector<1x128xf32>
    %377 = arith.mulf %314, %14 : vector<1x128xf32>
    %378 = arith.addf %376, %377 : vector<1x128xf32>
    %379 = arith.mulf %334, %18 : vector<1x128xf32>
    %380 = arith.addf %378, %379 : vector<1x128xf32>
    %381 = arith.mulf %370, %17 : vector<1x128xf32>
    %382 = arith.addf %380, %381 : vector<1x128xf32>
    %383 = math.tanh %382 : vector<1x128xf32>
    %384 = arith.mulf %21, %383 : vector<1x128xf32>
    %385 = arith.addf %384, %22 : vector<1x128xf32>
    %386 = vector.shape_cast %385 : vector<1x128xf32> to vector<1x1x128xf32>
    %cst_62 = arith.constant dense<0.000000e+00> : vector<1xf32>
    %387 = vector.multi_reduction <add>, %386, %cst_62 [1, 2] : vector<1x1x128xf32> to vector<1xf32>
    %388 = vector.shape_cast %387 : vector<1xf32> to vector<1x1x1xf32>
    %389 = vector.extract %388[0, 0, 0] : f32 from vector<1x1x1xf32>
    %390 = vector.broadcast %389 : f32 to vector<1x128xf32>
    %c0_63 = arith.constant 0 : index
    %c5 = arith.constant 5 : index
    %391 = memref.load %arg1[%c0_63, %c5] : memref<1x23xf32, #tpu.memory_space<smem>>
    %392 = vector.broadcast %391 : f32 to vector<1x128xf32>
    %393 = arith.mulf %392, %7 : vector<1x128xf32>
    %394 = arith.addf %11, %393 : vector<1x128xf32>
    %c0_64 = arith.constant 0 : index
    %c4_65 = arith.constant 4 : index
    %395 = memref.load %arg1[%c0_64, %c4_65] : memref<1x23xf32, #tpu.memory_space<smem>>
    %396 = vector.broadcast %395 : f32 to vector<1x128xf32>
    %397 = arith.mulf %396, %8 : vector<1x128xf32>
    %398 = arith.addf %394, %397 : vector<1x128xf32>
    %c0_66 = arith.constant 0 : index
    %c3_67 = arith.constant 3 : index
    %399 = memref.load %arg1[%c0_66, %c3_67] : memref<1x23xf32, #tpu.memory_space<smem>>
    %400 = vector.broadcast %399 : f32 to vector<1x128xf32>
    %401 = arith.mulf %400, %9 : vector<1x128xf32>
    %402 = arith.addf %398, %401 : vector<1x128xf32>
    %c0_68 = arith.constant 0 : index
    %c2_69 = arith.constant 2 : index
    %403 = memref.load %arg1[%c0_68, %c2_69] : memref<1x23xf32, #tpu.memory_space<smem>>
    %404 = vector.broadcast %403 : f32 to vector<1x128xf32>
    %405 = arith.mulf %404, %10 : vector<1x128xf32>
    %406 = arith.addf %402, %405 : vector<1x128xf32>
    %407 = arith.mulf %314, %2 : vector<1x128xf32>
    %408 = arith.addf %406, %407 : vector<1x128xf32>
    %409 = arith.mulf %258, %3 : vector<1x128xf32>
    %410 = arith.addf %408, %409 : vector<1x128xf32>
    %411 = arith.mulf %334, %5 : vector<1x128xf32>
    %412 = arith.addf %410, %411 : vector<1x128xf32>
    %413 = arith.mulf %278, %6 : vector<1x128xf32>
    %414 = arith.addf %412, %413 : vector<1x128xf32>
    %415 = arith.mulf %370, %1 : vector<1x128xf32>
    %416 = arith.addf %414, %415 : vector<1x128xf32>
    %417 = arith.mulf %390, %4 : vector<1x128xf32>
    %418 = arith.addf %416, %417 : vector<1x128xf32>
    %419 = math.tanh %418 : vector<1x128xf32>
    %420 = arith.mulf %12, %419 : vector<1x128xf32>
    %421 = arith.addf %420, %13 : vector<1x128xf32>
    %422 = vector.shape_cast %421 : vector<1x128xf32> to vector<1x1x128xf32>
    %cst_70 = arith.constant dense<0.000000e+00> : vector<1xf32>
    %423 = vector.multi_reduction <add>, %422, %cst_70 [1, 2] : vector<1x1x128xf32> to vector<1xf32>
    %424 = vector.shape_cast %423 : vector<1xf32> to vector<1x1x1xf32>
    %425 = vector.extract %424[0, 0, 0] : f32 from vector<1x1x1xf32>
    %426 = vector.broadcast %425 : f32 to vector<1x128xf32>
    %427 = arith.mulf %314, %15 : vector<1x128xf32>
    %428 = arith.addf %20, %427 : vector<1x128xf32>
    %429 = arith.mulf %258, %16 : vector<1x128xf32>
    %430 = arith.addf %428, %429 : vector<1x128xf32>
    %431 = arith.mulf %334, %19 : vector<1x128xf32>
    %432 = arith.addf %430, %431 : vector<1x128xf32>
    %433 = arith.mulf %370, %14 : vector<1x128xf32>
    %434 = arith.addf %432, %433 : vector<1x128xf32>
    %435 = arith.mulf %390, %18 : vector<1x128xf32>
    %436 = arith.addf %434, %435 : vector<1x128xf32>
    %437 = arith.mulf %426, %17 : vector<1x128xf32>
    %438 = arith.addf %436, %437 : vector<1x128xf32>
    %439 = math.tanh %438 : vector<1x128xf32>
    %440 = arith.mulf %21, %439 : vector<1x128xf32>
    %441 = arith.addf %440, %22 : vector<1x128xf32>
    %442 = vector.shape_cast %441 : vector<1x128xf32> to vector<1x1x128xf32>
    %cst_71 = arith.constant dense<0.000000e+00> : vector<1xf32>
    %443 = vector.multi_reduction <add>, %442, %cst_71 [1, 2] : vector<1x1x128xf32> to vector<1xf32>
    %444 = vector.shape_cast %443 : vector<1xf32> to vector<1x1x1xf32>
    %445 = vector.extract %444[0, 0, 0] : f32 from vector<1x1x1xf32>
    %446 = vector.broadcast %445 : f32 to vector<1x128xf32>
    %c0_72 = arith.constant 0 : index
    %c6 = arith.constant 6 : index
    %447 = memref.load %arg1[%c0_72, %c6] : memref<1x23xf32, #tpu.memory_space<smem>>
    %448 = vector.broadcast %447 : f32 to vector<1x128xf32>
    %449 = arith.mulf %448, %7 : vector<1x128xf32>
    %450 = arith.addf %11, %449 : vector<1x128xf32>
    %c0_73 = arith.constant 0 : index
    %c5_74 = arith.constant 5 : index
    %451 = memref.load %arg1[%c0_73, %c5_74] : memref<1x23xf32, #tpu.memory_space<smem>>
    %452 = vector.broadcast %451 : f32 to vector<1x128xf32>
    %453 = arith.mulf %452, %8 : vector<1x128xf32>
    %454 = arith.addf %450, %453 : vector<1x128xf32>
    %c0_75 = arith.constant 0 : index
    %c4_76 = arith.constant 4 : index
    %455 = memref.load %arg1[%c0_75, %c4_76] : memref<1x23xf32, #tpu.memory_space<smem>>
    %456 = vector.broadcast %455 : f32 to vector<1x128xf32>
    %457 = arith.mulf %456, %9 : vector<1x128xf32>
    %458 = arith.addf %454, %457 : vector<1x128xf32>
    %c0_77 = arith.constant 0 : index
    %c3_78 = arith.constant 3 : index
    %459 = memref.load %arg1[%c0_77, %c3_78] : memref<1x23xf32, #tpu.memory_space<smem>>
    %460 = vector.broadcast %459 : f32 to vector<1x128xf32>
    %461 = arith.mulf %460, %10 : vector<1x128xf32>
    %462 = arith.addf %458, %461 : vector<1x128xf32>
    %463 = arith.mulf %370, %2 : vector<1x128xf32>
    %464 = arith.addf %462, %463 : vector<1x128xf32>
    %465 = arith.mulf %314, %3 : vector<1x128xf32>
    %466 = arith.addf %464, %465 : vector<1x128xf32>
    %467 = arith.mulf %390, %5 : vector<1x128xf32>
    %468 = arith.addf %466, %467 : vector<1x128xf32>
    %469 = arith.mulf %334, %6 : vector<1x128xf32>
    %470 = arith.addf %468, %469 : vector<1x128xf32>
    %471 = arith.mulf %426, %1 : vector<1x128xf32>
    %472 = arith.addf %470, %471 : vector<1x128xf32>
    %473 = arith.mulf %446, %4 : vector<1x128xf32>
    %474 = arith.addf %472, %473 : vector<1x128xf32>
    %475 = math.tanh %474 : vector<1x128xf32>
    %476 = arith.mulf %12, %475 : vector<1x128xf32>
    %477 = arith.addf %476, %13 : vector<1x128xf32>
    %478 = vector.shape_cast %477 : vector<1x128xf32> to vector<1x1x128xf32>
    %cst_79 = arith.constant dense<0.000000e+00> : vector<1xf32>
    %479 = vector.multi_reduction <add>, %478, %cst_79 [1, 2] : vector<1x1x128xf32> to vector<1xf32>
    %480 = vector.shape_cast %479 : vector<1xf32> to vector<1x1x1xf32>
    %481 = vector.extract %480[0, 0, 0] : f32 from vector<1x1x1xf32>
    %482 = vector.broadcast %481 : f32 to vector<1x128xf32>
    %483 = arith.mulf %370, %15 : vector<1x128xf32>
    %484 = arith.addf %20, %483 : vector<1x128xf32>
    %485 = arith.mulf %314, %16 : vector<1x128xf32>
    %486 = arith.addf %484, %485 : vector<1x128xf32>
    %487 = arith.mulf %390, %19 : vector<1x128xf32>
    %488 = arith.addf %486, %487 : vector<1x128xf32>
    %489 = arith.mulf %426, %14 : vector<1x128xf32>
    %490 = arith.addf %488, %489 : vector<1x128xf32>
    %491 = arith.mulf %446, %18 : vector<1x128xf32>
    %492 = arith.addf %490, %491 : vector<1x128xf32>
    %493 = arith.mulf %482, %17 : vector<1x128xf32>
    %494 = arith.addf %492, %493 : vector<1x128xf32>
    %495 = math.tanh %494 : vector<1x128xf32>
    %496 = arith.mulf %21, %495 : vector<1x128xf32>
    %497 = arith.addf %496, %22 : vector<1x128xf32>
    %498 = vector.shape_cast %497 : vector<1x128xf32> to vector<1x1x128xf32>
    %cst_80 = arith.constant dense<0.000000e+00> : vector<1xf32>
    %499 = vector.multi_reduction <add>, %498, %cst_80 [1, 2] : vector<1x1x128xf32> to vector<1xf32>
    %500 = vector.shape_cast %499 : vector<1xf32> to vector<1x1x1xf32>
    %501 = vector.extract %500[0, 0, 0] : f32 from vector<1x1x1xf32>
    %c0_81 = arith.constant 0 : index
    %c0_82 = arith.constant 0 : index
    %502 = memref.load %arg2[%c0_81, %c0_82] : memref<1x8xf32, #tpu.memory_space<smem>>
    memref.store %99, %arg2[%c0_81, %c0_82] : memref<1x8xf32, #tpu.memory_space<smem>>
    %c0_83 = arith.constant 0 : index
    %c1_84 = arith.constant 1 : index
    %503 = memref.load %arg2[%c0_83, %c1_84] : memref<1x8xf32, #tpu.memory_space<smem>>
    memref.store %162, %arg2[%c0_83, %c1_84] : memref<1x8xf32, #tpu.memory_space<smem>>
    %c0_85 = arith.constant 0 : index
    %c2_86 = arith.constant 2 : index
    %504 = memref.load %arg2[%c0_85, %c2_86] : memref<1x8xf32, #tpu.memory_space<smem>>
    memref.store %221, %arg2[%c0_85, %c2_86] : memref<1x8xf32, #tpu.memory_space<smem>>
    %c0_87 = arith.constant 0 : index
    %c3_88 = arith.constant 3 : index
    %505 = memref.load %arg2[%c0_87, %c3_88] : memref<1x8xf32, #tpu.memory_space<smem>>
    memref.store %277, %arg2[%c0_87, %c3_88] : memref<1x8xf32, #tpu.memory_space<smem>>
    %c0_89 = arith.constant 0 : index
    %c4_90 = arith.constant 4 : index
    %506 = memref.load %arg2[%c0_89, %c4_90] : memref<1x8xf32, #tpu.memory_space<smem>>
    memref.store %333, %arg2[%c0_89, %c4_90] : memref<1x8xf32, #tpu.memory_space<smem>>
    %c0_91 = arith.constant 0 : index
    %c5_92 = arith.constant 5 : index
    %507 = memref.load %arg2[%c0_91, %c5_92] : memref<1x8xf32, #tpu.memory_space<smem>>
    memref.store %389, %arg2[%c0_91, %c5_92] : memref<1x8xf32, #tpu.memory_space<smem>>
    %c0_93 = arith.constant 0 : index
    %c6_94 = arith.constant 6 : index
    %508 = memref.load %arg2[%c0_93, %c6_94] : memref<1x8xf32, #tpu.memory_space<smem>>
    memref.store %445, %arg2[%c0_93, %c6_94] : memref<1x8xf32, #tpu.memory_space<smem>>
    %c0_95 = arith.constant 0 : index
    %c7 = arith.constant 7 : index
    %509 = memref.load %arg2[%c0_95, %c7] : memref<1x8xf32, #tpu.memory_space<smem>>
    memref.store %501, %arg2[%c0_95, %c7] : memref<1x8xf32, #tpu.memory_space<smem>>
    %c0_96 = arith.constant 0 : index
    %c0_97 = arith.constant 0 : index
    %510 = memref.load %arg3[%c0_96, %c0_97] : memref<1x15xf32, #tpu.memory_space<smem>>
    memref.store %481, %arg3[%c0_96, %c0_97] : memref<1x15xf32, #tpu.memory_space<smem>>
    %c0_98 = arith.constant 0 : index
    %c1_99 = arith.constant 1 : index
    %511 = memref.load %arg3[%c0_98, %c1_99] : memref<1x15xf32, #tpu.memory_space<smem>>
    memref.store %425, %arg3[%c0_98, %c1_99] : memref<1x15xf32, #tpu.memory_space<smem>>
    %c0_100 = arith.constant 0 : index
    %c2_101 = arith.constant 2 : index
    %512 = memref.load %arg3[%c0_100, %c2_101] : memref<1x15xf32, #tpu.memory_space<smem>>
    memref.store %369, %arg3[%c0_100, %c2_101] : memref<1x15xf32, #tpu.memory_space<smem>>
    %c0_102 = arith.constant 0 : index
    %c7_103 = arith.constant 7 : index
    %513 = memref.load %arg1[%c0_102, %c7_103] : memref<1x23xf32, #tpu.memory_space<smem>>
    %c0_104 = arith.constant 0 : index
    %c3_105 = arith.constant 3 : index
    %514 = memref.load %arg3[%c0_104, %c3_105] : memref<1x15xf32, #tpu.memory_space<smem>>
    memref.store %513, %arg3[%c0_104, %c3_105] : memref<1x15xf32, #tpu.memory_space<smem>>
    %c0_106 = arith.constant 0 : index
    %c6_107 = arith.constant 6 : index
    %515 = memref.load %arg1[%c0_106, %c6_107] : memref<1x23xf32, #tpu.memory_space<smem>>
    %c0_108 = arith.constant 0 : index
    %c4_109 = arith.constant 4 : index
    %516 = memref.load %arg3[%c0_108, %c4_109] : memref<1x15xf32, #tpu.memory_space<smem>>
    memref.store %515, %arg3[%c0_108, %c4_109] : memref<1x15xf32, #tpu.memory_space<smem>>
    %c0_110 = arith.constant 0 : index
    %c5_111 = arith.constant 5 : index
    %517 = memref.load %arg1[%c0_110, %c5_111] : memref<1x23xf32, #tpu.memory_space<smem>>
    %c0_112 = arith.constant 0 : index
    %c5_113 = arith.constant 5 : index
    %518 = memref.load %arg3[%c0_112, %c5_113] : memref<1x15xf32, #tpu.memory_space<smem>>
    memref.store %517, %arg3[%c0_112, %c5_113] : memref<1x15xf32, #tpu.memory_space<smem>>
    %c0_114 = arith.constant 0 : index
    %c4_115 = arith.constant 4 : index
    %519 = memref.load %arg1[%c0_114, %c4_115] : memref<1x23xf32, #tpu.memory_space<smem>>
    %c0_116 = arith.constant 0 : index
    %c6_117 = arith.constant 6 : index
    %520 = memref.load %arg3[%c0_116, %c6_117] : memref<1x15xf32, #tpu.memory_space<smem>>
    memref.store %519, %arg3[%c0_116, %c6_117] : memref<1x15xf32, #tpu.memory_space<smem>>
    %c0_118 = arith.constant 0 : index
    %c7_119 = arith.constant 7 : index
    %521 = memref.load %arg3[%c0_118, %c7_119] : memref<1x15xf32, #tpu.memory_space<smem>>
    memref.store %501, %arg3[%c0_118, %c7_119] : memref<1x15xf32, #tpu.memory_space<smem>>
    %c0_120 = arith.constant 0 : index
    %c8_121 = arith.constant 8 : index
    %522 = memref.load %arg3[%c0_120, %c8_121] : memref<1x15xf32, #tpu.memory_space<smem>>
    memref.store %445, %arg3[%c0_120, %c8_121] : memref<1x15xf32, #tpu.memory_space<smem>>
    %c0_122 = arith.constant 0 : index
    %c9_123 = arith.constant 9 : index
    %523 = memref.load %arg3[%c0_122, %c9_123] : memref<1x15xf32, #tpu.memory_space<smem>>
    memref.store %389, %arg3[%c0_122, %c9_123] : memref<1x15xf32, #tpu.memory_space<smem>>
    %c0_124 = arith.constant 0 : index
    %c10_125 = arith.constant 10 : index
    %524 = memref.load %arg3[%c0_124, %c10_125] : memref<1x15xf32, #tpu.memory_space<smem>>
    memref.store %481, %arg3[%c0_124, %c10_125] : memref<1x15xf32, #tpu.memory_space<smem>>
    %c0_126 = arith.constant 0 : index
    %c11_127 = arith.constant 11 : index
    %525 = memref.load %arg3[%c0_126, %c11_127] : memref<1x15xf32, #tpu.memory_space<smem>>
    memref.store %425, %arg3[%c0_126, %c11_127] : memref<1x15xf32, #tpu.memory_space<smem>>
    %c0_128 = arith.constant 0 : index
    %c12_129 = arith.constant 12 : index
    %526 = memref.load %arg3[%c0_128, %c12_129] : memref<1x15xf32, #tpu.memory_space<smem>>
    memref.store %369, %arg3[%c0_128, %c12_129] : memref<1x15xf32, #tpu.memory_space<smem>>
    %c0_130 = arith.constant 0 : index
    %c13_131 = arith.constant 13 : index
    %527 = memref.load %arg3[%c0_130, %c13_131] : memref<1x15xf32, #tpu.memory_space<smem>>
    memref.store %501, %arg3[%c0_130, %c13_131] : memref<1x15xf32, #tpu.memory_space<smem>>
    %c0_132 = arith.constant 0 : index
    %c14_133 = arith.constant 14 : index
    %528 = memref.load %arg3[%c0_132, %c14_133] : memref<1x15xf32, #tpu.memory_space<smem>>
    memref.store %445, %arg3[%c0_132, %c14_133] : memref<1x15xf32, #tpu.memory_space<smem>>
    return
  }
}

</mosaic_0001>

<llo_original>
// kernel: _lambda_.1
$region0: #{_lambda_.1}
  #allocation0 [shape = 'u32[]', space=smem, size = 0x4, offset = 0x4, fixed_abs, tag = 'smem constant byte address 0x4 - core index']
  #allocation1 [shape = 'u32[144,128]{1,0:T(1,128)}', space=vmem, size = 0x12000, scoped, tag = 'internal scratch']
  %s0 = inlined_call_operand.vmem [shape: f32[24,128], index: 0, kind: input, shape index: {}]
  %s1 = inlined_call_operand.vmem [shape: f32[1,23], index: 1, kind: input, shape index: {}]
  %s2 = inlined_call_operand.hbm [shape: f32[1,8], index: 2, kind: output, shape index: {0}]
  %s3 = inlined_call_operand.vmem [shape: f32[1,15], index: 3, kind: output, shape index: {1}]
  %4 = xla_tuple %s2, %s3
  %s5 = sld [smem:[#allocation0]]
  $region30: #{_lambda_.1} parent=0
    _
  %s7 = ssub.s32 1, %s5
  %s8 = scalar_select 0, %s7, %s5
  $region1: #{_lambda_.1} parent=0
    #allocation2 [shape = 'u8[512]{0}', space=smem, size = 0x200, scoped, tag = 'input window, operand 1, single buffered']
    #allocation3 [shape = 's32[1]{0}', space=sflag, size = 0x4, scoped, tag = 'scoped memory for _lambda_.1']
    #allocation4 [shape = 's32[1]{0}', space=sflag, size = 0x4, scoped, tag = 'scoped memory for _lambda_.1']
    #allocation5 [shape = 's32[1]{0}', space=sflag, size = 0x4, scoped, tag = 'scoped memory for _lambda_.1']
    #allocation6 [shape = 'u8[512]{0}', space=smem, size = 0x200, scoped, tag = 'output window, operand 0, single buffered']
    #allocation7 [shape = 'u8[512]{0}', space=smem, size = 0x200, scoped, tag = 'output window, operand 1, single buffered']
    %9 = vsyncpa [#allocation4], 0
    %10 = vsyncpa [#allocation3], 0
    %11 = vsyncpa [#allocation5], 0
    // Predicated region
    $region2: #{_lambda_.1} parent=1 // pred_check
      _
    $region3: #{_lambda_.1} parent=1 // pred_check_branch
      %13 = sbr.rel (0) target = $region5
    $region4: #{_lambda_.1} parent=1 // pred_region
      _
    $region5: #{_lambda_.1} parent=1 // pred_fallthru
      _
    // Predicated region
    $region6: #{_lambda_.1} parent=1 // pred_check
      _
    $region7: #{_lambda_.1} parent=1 // pred_check_branch
      %15 = sbr.rel (0) target = $region9
    $region8: #{_lambda_.1} parent=1 // pred_region
      %s17 = ssub.s32 16, 16
      %18 = vsyncadd [#allocation4], %s17
      %s20 = sshll.u32 %s1, 4
      %s21 = int_to_ptr.vmem [resolvable:$true] %s20
      %23 = dma.vmem_to_smem %s21, 16, [#allocation2], [#allocation4]
    $region9: #{_lambda_.1} parent=1 // pred_fallthru
      _
    // Predicated region
    $region10: #{_lambda_.1} parent=1 // pred_check
      _
    $region11: #{_lambda_.1} parent=1 // pred_check_branch
      %25 = sbr.rel (0) target = $region13
    $region12: #{_lambda_.1} parent=1 // pred_region
      %26 = dma.done [#allocation4], 16
    $region13: #{_lambda_.1} parent=1 // pred_fallthru
      _
    %27 = sfence
    %v28 = vld [vmem:[%s0] sm:$0xff]
    %v29 = vld [vmem:[%s0 + $0x8] sm:$0xff]
    %v30 = vld [vmem:[%s0 + $0x10] sm:$0xff]
    %s31 = sld [smem:[#allocation2 + $0x8]]
    %s32 = sld [smem:[#allocation2 + $0x9]]
    %s33 = sld [smem:[#allocation2 + $0xa]]
    %s34 = sld [smem:[#allocation2 + $0xf]]
    %s35 = sld [smem:[#allocation2 + $0x10]]
    %s36 = sld [smem:[#allocation2 + $0x11]]
    %s37 = sld [smem:[#allocation2 + $0x12]]
    %s38 = sld [smem:[#allocation2 + $0x13]]
    %s39 = sld [smem:[#allocation2 + $0x14]]
    %s40 = sld [smem:[#allocation2 + $0x15]]
    %s41 = sld [smem:[#allocation2 + $0x16]]
    %s42 = sld [smem:[#allocation2 + $0xb]]
    %v43 = vstv %s42
    %v44 = vmul.f32 %v43, %v28
    %v46 = vrot.slane %v44, 4
    %v48 = vadd.f32 %v29, %v46
    %s49 = sld [smem:[#allocation2 + $0xc]]
    %v50 = vstv %s49
    %v51 = vmul.f32 %v50, %v28
    %v53 = vrot.slane %v51, 5
    %v55 = vadd.f32 %v48, %v53
    %s56 = sld [smem:[#allocation2 + $0xd]]
    %v57 = vstv %s56
    %v58 = vmul.f32 %v57, %v29
    %v60 = vrot.slane %v58, 6
    %v62 = vadd.f32 %v55, %v60
    %s63 = sld [smem:[#allocation2 + $0xe]]
    %v64 = vstv %s63
    %v65 = vmul.f32 %v64, %v29
    %v67 = vrot.slane %v65, 7
    %v69 = vadd.f32 %v62, %v67
    %v70 = vstv %s32
    %v71 = vmul.f32 %v70, %v28
    %v73 = vrot.slane %v71, 7
    %v75 = vadd.f32 %v69, %v73
    %v76 = vstv %s33
    %v77 = vmul.f32 %v76, %v28
    %v78 = vadd.f32 %v75, %v77
    %v79 = vstv %s35
    %v80 = vmul.f32 %v79, %v28
    %v82 = vrot.slane %v80, 2
    %v84 = vadd.f32 %v78, %v82
    %v85 = vstv %s36
    %v86 = vmul.f32 %v85, %v28
    %v88 = vrot.slane %v86, 3
    %v90 = vadd.f32 %v84, %v88
    %v91 = vstv %s31
    %v92 = vmul.f32 %v91, %v28
    %v94 = vrot.slane %v92, 6
    %v96 = vadd.f32 %v90, %v94
    %v97 = vstv %s34
    %v98 = vmul.f32 %v97, %v28
    %v100 = vrot.slane %v98, 1
    %v102 = vadd.f32 %v96, %v100
    %v103 = vtanh.pop %v102
    %v105 = vrot.slane %v103, 7
    %v107 = vmul.f32 %v29, %v105
    %v109 = vrot.slane %v29, 1
    %v111 = vadd.f32 %v107, %v109
    %v113 = vrot.slane %v111, 3
    %vm115 = vcmask 1040384
    %v116 = vsel %vm115, %v113, 0.0
    %117 = vadd.xlane.f32.xlu0 %v116
    %v118 = vpop.xlane.xlu0 %117
    %v119 = vrot.slane %v118, 4
    %v120 = vadd.f32 %v118, %v119
    %v121 = vrot.slane %v120, 2
    %v122 = vadd.f32 %v120, %v121
    %v123 = vrot.slane %v122, 1
    %v124 = vadd.f32 %v122, %v123
    %s125 = vtos %v124
    %v126 = vstv %s125
    %v127 = vstv %s38
    %v128 = vmul.f32 %v127, %v29
    %v130 = vrot.slane %v128, 3
    %v132 = vadd.f32 %v30, %v130
    %v133 = vstv %s39
    %v134 = vmul.f32 %v133, %v29
    %v136 = vrot.slane %v134, 4
    %v138 = vadd.f32 %v132, %v136
    %v139 = vstv %s41
    %v140 = vmul.f32 %v139, %v30
    %v142 = vrot.slane %v140, 7
    %v144 = vadd.f32 %v138, %v142
    %v145 = vstv %s37
    %v146 = vmul.f32 %v145, %v29
    %v148 = vrot.slane %v146, 2
    %v150 = vadd.f32 %v144, %v148
    %v151 = vstv %s40
    %v152 = vmul.f32 %v151, %v30
    %v154 = vrot.slane %v152, 6
    %v156 = vadd.f32 %v150, %v154
    %v157 = vmul.f32 %v126, %v30
    %v159 = vrot.slane %v157, 5
    %v161 = vadd.f32 %v156, %v159
    %v162 = vtanh.pop %v161
    %v164 = vrot.slane %v162, 7
    %v166 = vmul.f32 %v30, %v164
    %v168 = vrot.slane %v30, 1
    %v170 = vadd.f32 %v166, %v168
    %v172 = vrot.slane %v170, 4
    %v174 = vsel %vm115, %v172, 0.0
    %175 = vadd.xlane.f32.xlu0 %v174
    %v176 = vpop.xlane.xlu0 %175
    %v177 = vrot.slane %v176, 4
    %v178 = vadd.f32 %v176, %v177
    %v179 = vrot.slane %v178, 2
    %v180 = vadd.f32 %v178, %v179
    %v181 = vrot.slane %v180, 1
    %v182 = vadd.f32 %v180, %v181
    %s183 = vtos %v182
    %v184 = vstv %s183
    %s185 = sld [smem:[#allocation2]]
    %v186 = vstv %s185
    %v187 = vmul.f32 %v186, %v28
    %v189 = vrot.slane %v187, 4
    %v191 = vadd.f32 %v29, %v189
    %v192 = vrot.slane %v44, 5
    %v194 = vadd.f32 %v191, %v192
    %v195 = vmul.f32 %v50, %v29
    %v197 = vrot.slane %v195, 6
    %v199 = vadd.f32 %v194, %v197
    %v200 = vrot.slane %v58, 7
    %v202 = vadd.f32 %v199, %v200
    %v203 = vrot.slane %v92, 7
    %v205 = vadd.f32 %v202, %v203
    %v206 = vadd.f32 %v205, %v71
    %v207 = vrot.slane %v98, 2
    %v209 = vadd.f32 %v206, %v207
    %v210 = vrot.slane %v80, 3
    %v212 = vadd.f32 %v209, %v210
    %v213 = vmul.f32 %v126, %v28
    %v215 = vrot.slane %v213, 6
    %v217 = vadd.f32 %v212, %v215
    %v218 = vmul.f32 %v184, %v28
    %v220 = vrot.slane %v218, 1
    %v222 = vadd.f32 %v217, %v220
    %v223 = vtanh.pop %v222
    %v225 = vrot.slane %v223, 7
    %v227 = vmul.f32 %v29, %v225
    %v228 = vadd.f32 %v227, %v109
    %v230 = vrot.slane %v228, 3
    %v232 = vsel %vm115, %v230, 0.0
    %233 = vadd.xlane.f32.xlu0 %v232
    %v234 = vpop.xlane.xlu0 %233
    %v235 = vrot.slane %v234, 4
    %v236 = vadd.f32 %v234, %v235
    %v237 = vrot.slane %v236, 2
    %v238 = vadd.f32 %v236, %v237
    %v239 = vrot.slane %v238, 1
    %v240 = vadd.f32 %v238, %v239
    %s241 = vtos %v240
    %v242 = vstv %s241
    %v243 = vrot.slane %v146, 3
    %v245 = vadd.f32 %v30, %v243
    %v246 = vrot.slane %v128, 4
    %v248 = vadd.f32 %v245, %v246
    %v249 = vrot.slane %v152, 7
    %v251 = vadd.f32 %v248, %v249
    %v252 = vmul.f32 %v126, %v29
    %v254 = vrot.slane %v252, 2
    %v256 = vadd.f32 %v251, %v254
    %v257 = vmul.f32 %v184, %v30
    %v259 = vrot.slane %v257, 6
    %v261 = vadd.f32 %v256, %v259
    %v262 = vmul.f32 %v242, %v30
    %v264 = vrot.slane %v262, 5
    %v266 = vadd.f32 %v261, %v264
    %v267 = vtanh.pop %v266
    %v269 = vrot.slane %v267, 7
    %v271 = vmul.f32 %v30, %v269
    %v272 = vadd.f32 %v271, %v168
    %v274 = vrot.slane %v272, 4
    %v276 = vsel %vm115, %v274, 0.0
    %277 = vadd.xlane.f32.xlu0 %v276
    %v278 = vpop.xlane.xlu0 %277
    %v279 = vrot.slane %v278, 4
    %v280 = vadd.f32 %v278, %v279
    %v281 = vrot.slane %v280, 2
    %v282 = vadd.f32 %v280, %v281
    %v283 = vrot.slane %v282, 1
    %v284 = vadd.f32 %v282, %v283
    %s285 = vtos %v284
    %v286 = vstv %s285
    %s287 = sld [smem:[#allocation2 + $0x1]]
    %v288 = vstv %s287
    %v289 = vmul.f32 %v288, %v28
    %v291 = vrot.slane %v289, 4
    %v293 = vadd.f32 %v29, %v291
    %v294 = vrot.slane %v187, 5
    %v296 = vadd.f32 %v293, %v294
    %v297 = vmul.f32 %v43, %v29
    %v299 = vrot.slane %v297, 6
    %v301 = vadd.f32 %v296, %v299
    %v302 = vrot.slane %v195, 7
    %v304 = vadd.f32 %v301, %v302
    %v305 = vrot.slane %v213, 7
    %v307 = vadd.f32 %v304, %v305
    %v308 = vadd.f32 %v307, %v92
    %v309 = vrot.slane %v218, 2
    %v311 = vadd.f32 %v308, %v309
    %v312 = vrot.slane %v98, 3
    %v314 = vadd.f32 %v311, %v312
    %v315 = vmul.f32 %v242, %v28
    %v317 = vrot.slane %v315, 6
    %v319 = vadd.f32 %v314, %v317
    %v320 = vmul.f32 %v286, %v28
    %v322 = vrot.slane %v320, 1
    %v324 = vadd.f32 %v319, %v322
    %v325 = vtanh.pop %v324
    %v327 = vrot.slane %v325, 7
    %v329 = vmul.f32 %v29, %v327
    %v330 = vadd.f32 %v329, %v109
    %v332 = vrot.slane %v330, 3
    %v334 = vsel %vm115, %v332, 0.0
    %335 = vadd.xlane.f32.xlu0 %v334
    %v336 = vpop.xlane.xlu0 %335
    %v337 = vrot.slane %v336, 4
    %v338 = vadd.f32 %v336, %v337
    %v339 = vrot.slane %v338, 2
    %v340 = vadd.f32 %v338, %v339
    %v341 = vrot.slane %v340, 1
    %v342 = vadd.f32 %v340, %v341
    %s343 = vtos %v342
    %v344 = vstv %s343
    %v345 = vrot.slane %v252, 3
    %v347 = vadd.f32 %v30, %v345
    %v348 = vrot.slane %v146, 4
    %v350 = vadd.f32 %v347, %v348
    %v351 = vrot.slane %v257, 7
    %v353 = vadd.f32 %v350, %v351
    %v354 = vmul.f32 %v242, %v29
    %v356 = vrot.slane %v354, 2
    %v358 = vadd.f32 %v353, %v356
    %v359 = vmul.f32 %v286, %v30
    %v361 = vrot.slane %v359, 6
    %v363 = vadd.f32 %v358, %v361
    %v364 = vmul.f32 %v344, %v30
    %v366 = vrot.slane %v364, 5
    %v368 = vadd.f32 %v363, %v366
    %v369 = vtanh.pop %v368
    %v371 = vrot.slane %v369, 7
    %v373 = vmul.f32 %v30, %v371
    %v374 = vadd.f32 %v373, %v168
    %v376 = vrot.slane %v374, 4
    %v378 = vsel %vm115, %v376, 0.0
    %379 = vadd.xlane.f32.xlu0 %v378
    %v380 = vpop.xlane.xlu0 %379
    %v381 = vrot.slane %v380, 4
    %v382 = vadd.f32 %v380, %v381
    %v383 = vrot.slane %v382, 2
    %v384 = vadd.f32 %v382, %v383
    %v385 = vrot.slane %v384, 1
    %v386 = vadd.f32 %v384, %v385
    %s387 = vtos %v386
    %v388 = vstv %s387
    %s389 = sld [smem:[#allocation2 + $0x2]]
    %v390 = vstv %s389
    %v391 = vmul.f32 %v390, %v28
    %v393 = vrot.slane %v391, 4
    %v395 = vadd.f32 %v29, %v393
    %v396 = vrot.slane %v289, 5
    %v398 = vadd.f32 %v395, %v396
    %v399 = vmul.f32 %v186, %v29
    %v401 = vrot.slane %v399, 6
    %v403 = vadd.f32 %v398, %v401
    %v404 = vrot.slane %v297, 7
    %v406 = vadd.f32 %v403, %v404
    %v407 = vrot.slane %v315, 7
    %v409 = vadd.f32 %v406, %v407
    %v410 = vadd.f32 %v409, %v213
    %v411 = vrot.slane %v320, 2
    %v413 = vadd.f32 %v410, %v411
    %v414 = vrot.slane %v218, 3
    %v416 = vadd.f32 %v413, %v414
    %v417 = vmul.f32 %v344, %v28
    %v419 = vrot.slane %v417, 6
    %v421 = vadd.f32 %v416, %v419
    %v422 = vmul.f32 %v388, %v28
    %v424 = vrot.slane %v422, 1
    %v426 = vadd.f32 %v421, %v424
    %v427 = vtanh.pop %v426
    %v429 = vrot.slane %v427, 7
    %v431 = vmul.f32 %v29, %v429
    %v432 = vadd.f32 %v431, %v109
    %v434 = vrot.slane %v432, 3
    %v436 = vsel %vm115, %v434, 0.0
    %437 = vadd.xlane.f32.xlu0 %v436
    %v438 = vpop.xlane.xlu0 %437
    %v439 = vrot.slane %v438, 4
    %v440 = vadd.f32 %v438, %v439
    %v441 = vrot.slane %v440, 2
    %v442 = vadd.f32 %v440, %v441
    %v443 = vrot.slane %v442, 1
    %v444 = vadd.f32 %v442, %v443
    %s445 = vtos %v444
    %v446 = vstv %s445
    %v447 = vrot.slane %v354, 3
    %v449 = vadd.f32 %v30, %v447
    %v450 = vrot.slane %v252, 4
    %v452 = vadd.f32 %v449, %v450
    %v453 = vrot.slane %v359, 7
    %v455 = vadd.f32 %v452, %v453
    %v456 = vmul.f32 %v344, %v29
    %v458 = vrot.slane %v456, 2
    %v460 = vadd.f32 %v455, %v458
    %v461 = vmul.f32 %v388, %v30
    %v463 = vrot.slane %v461, 6
    %v465 = vadd.f32 %v460, %v463
    %v466 = vmul.f32 %v446, %v30
    %v468 = vrot.slane %v466, 5
    %v470 = vadd.f32 %v465, %v468
    %v471 = vtanh.pop %v470
    %v473 = vrot.slane %v471, 7
    %v475 = vmul.f32 %v30, %v473
    %v476 = vadd.f32 %v475, %v168
    %v478 = vrot.slane %v476, 4
    %v480 = vsel %vm115, %v478, 0.0
    %481 = vadd.xlane.f32.xlu0 %v480
    %v482 = vpop.xlane.xlu0 %481
    %v483 = vrot.slane %v482, 4
    %v484 = vadd.f32 %v482, %v483
    %v485 = vrot.slane %v484, 2
    %v486 = vadd.f32 %v484, %v485
    %v487 = vrot.slane %v486, 1
    %v488 = vadd.f32 %v486, %v487
    %s489 = vtos %v488
    %v490 = vstv %s489
    %s491 = sld [smem:[#allocation2 + $0x3]]
    %v492 = vstv %s491
    %v493 = vmul.f32 %v492, %v28
    %v495 = vrot.slane %v493, 4
    %v497 = vadd.f32 %v29, %v495
    %v498 = vrot.slane %v391, 5
    %v500 = vadd.f32 %v497, %v498
    %v501 = vmul.f32 %v288, %v29
    %v503 = vrot.slane %v501, 6
    %v505 = vadd.f32 %v500, %v503
    %v506 = vrot.slane %v399, 7
    %v508 = vadd.f32 %v505, %v506
    %v509 = vrot.slane %v417, 7
    %v511 = vadd.f32 %v508, %v509
    %v512 = vadd.f32 %v511, %v315
    %v513 = vrot.slane %v422, 2
    %v515 = vadd.f32 %v512, %v513
    %v516 = vrot.slane %v320, 3
    %v518 = vadd.f32 %v515, %v516
    %v519 = vmul.f32 %v446, %v28
    %v521 = vrot.slane %v519, 6
    %v523 = vadd.f32 %v518, %v521
    %v524 = vmul.f32 %v490, %v28
    %v526 = vrot.slane %v524, 1
    %v528 = vadd.f32 %v523, %v526
    %v529 = vtanh.pop %v528
    %v531 = vrot.slane %v529, 7
    %v533 = vmul.f32 %v29, %v531
    %v534 = vadd.f32 %v533, %v109
    %v536 = vrot.slane %v534, 3
    %v538 = vsel %vm115, %v536, 0.0
    %539 = vadd.xlane.f32.xlu0 %v538
    %v540 = vpop.xlane.xlu0 %539
    %v541 = vrot.slane %v540, 4
    %v542 = vadd.f32 %v540, %v541
    %v543 = vrot.slane %v542, 2
    %v544 = vadd.f32 %v542, %v543
    %v545 = vrot.slane %v544, 1
    %v546 = vadd.f32 %v544, %v545
    %s547 = vtos %v546
    %v548 = vstv %s547
    %v549 = vrot.slane %v456, 3
    %v551 = vadd.f32 %v30, %v549
    %v552 = vrot.slane %v354, 4
    %v554 = vadd.f32 %v551, %v552
    %v555 = vrot.slane %v461, 7
    %v557 = vadd.f32 %v554, %v555
    %v558 = vmul.f32 %v446, %v29
    %v560 = vrot.slane %v558, 2
    %v562 = vadd.f32 %v557, %v560
    %v563 = vmul.f32 %v490, %v30
    %v565 = vrot.slane %v563, 6
    %v567 = vadd.f32 %v562, %v565
    %v568 = vmul.f32 %v548, %v30
    %v570 = vrot.slane %v568, 5
    %v572 = vadd.f32 %v567, %v570
    %v573 = vtanh.pop %v572
    %v575 = vrot.slane %v573, 7
    %v577 = vmul.f32 %v30, %v575
    %v578 = vadd.f32 %v577, %v168
    %v580 = vrot.slane %v578, 4
    %v582 = vsel %vm115, %v580, 0.0
    %583 = vadd.xlane.f32.xlu0 %v582
    %v584 = vpop.xlane.xlu0 %583
    %v585 = vrot.slane %v584, 4
    %v586 = vadd.f32 %v584, %v585
    %v587 = vrot.slane %v586, 2
    %v588 = vadd.f32 %v586, %v587
    %v589 = vrot.slane %v588, 1
    %v590 = vadd.f32 %v588, %v589
    %s591 = vtos %v590
    %v592 = vstv %s591
    %s593 = sld [smem:[#allocation2 + $0x4]]
    %v594 = vstv %s593
    %v595 = vmul.f32 %v594, %v28
    %v597 = vrot.slane %v595, 4
    %v599 = vadd.f32 %v29, %v597
    %v600 = vrot.slane %v493, 5
    %v602 = vadd.f32 %v599, %v600
    %v603 = vmul.f32 %v390, %v29
    %v605 = vrot.slane %v603, 6
    %v607 = vadd.f32 %v602, %v605
    %v608 = vrot.slane %v501, 7
    %v610 = vadd.f32 %v607, %v608
    %v611 = vrot.slane %v519, 7
    %v613 = vadd.f32 %v610, %v611
    %v614 = vadd.f32 %v613, %v417
    %v615 = vrot.slane %v524, 2
    %v617 = vadd.f32 %v614, %v615
    %v618 = vrot.slane %v422, 3
    %v620 = vadd.f32 %v617, %v618
    %v621 = vmul.f32 %v548, %v28
    %v623 = vrot.slane %v621, 6
    %v625 = vadd.f32 %v620, %v623
    %v626 = vmul.f32 %v592, %v28
    %v628 = vrot.slane %v626, 1
    %v630 = vadd.f32 %v625, %v628
    %v631 = vtanh.pop %v630
    %v633 = vrot.slane %v631, 7
    %v635 = vmul.f32 %v29, %v633
    %v636 = vadd.f32 %v635, %v109
    %v638 = vrot.slane %v636, 3
    %v640 = vsel %vm115, %v638, 0.0
    %641 = vadd.xlane.f32.xlu0 %v640
    %v642 = vpop.xlane.xlu0 %641
    %v643 = vrot.slane %v642, 4
    %v644 = vadd.f32 %v642, %v643
    %v645 = vrot.slane %v644, 2
    %v646 = vadd.f32 %v644, %v645
    %v647 = vrot.slane %v646, 1
    %v648 = vadd.f32 %v646, %v647
    %s649 = vtos %v648
    %v650 = vstv %s649
    %v651 = vrot.slane %v558, 3
    %v653 = vadd.f32 %v30, %v651
    %v654 = vrot.slane %v456, 4
    %v656 = vadd.f32 %v653, %v654
    %v657 = vrot.slane %v563, 7
    %v659 = vadd.f32 %v656, %v657
    %v660 = vmul.f32 %v548, %v29
    %v662 = vrot.slane %v660, 2
    %v664 = vadd.f32 %v659, %v662
    %v665 = vmul.f32 %v592, %v30
    %v667 = vrot.slane %v665, 6
    %v669 = vadd.f32 %v664, %v667
    %v670 = vmul.f32 %v650, %v30
    %v672 = vrot.slane %v670, 5
    %v674 = vadd.f32 %v669, %v672
    %v675 = vtanh.pop %v674
    %v677 = vrot.slane %v675, 7
    %v679 = vmul.f32 %v30, %v677
    %v680 = vadd.f32 %v679, %v168
    %v682 = vrot.slane %v680, 4
    %v684 = vsel %vm115, %v682, 0.0
    %685 = vadd.xlane.f32.xlu0 %v684
    %v686 = vpop.xlane.xlu0 %685
    %v687 = vrot.slane %v686, 4
    %v688 = vadd.f32 %v686, %v687
    %v689 = vrot.slane %v688, 2
    %v690 = vadd.f32 %v688, %v689
    %v691 = vrot.slane %v690, 1
    %v692 = vadd.f32 %v690, %v691
    %s693 = vtos %v692
    %v694 = vstv %s693
    %s695 = sld [smem:[#allocation2 + $0x5]]
    %v696 = vstv %s695
    %v697 = vmul.f32 %v696, %v28
    %v699 = vrot.slane %v697, 4
    %v701 = vadd.f32 %v29, %v699
    %v702 = vrot.slane %v595, 5
    %v704 = vadd.f32 %v701, %v702
    %v705 = vmul.f32 %v492, %v29
    %v707 = vrot.slane %v705, 6
    %v709 = vadd.f32 %v704, %v707
    %v710 = vrot.slane %v603, 7
    %v712 = vadd.f32 %v709, %v710
    %v713 = vrot.slane %v621, 7
    %v715 = vadd.f32 %v712, %v713
    %v716 = vadd.f32 %v715, %v519
    %v717 = vrot.slane %v626, 2
    %v719 = vadd.f32 %v716, %v717
    %v720 = vrot.slane %v524, 3
    %v722 = vadd.f32 %v719, %v720
    %v723 = vmul.f32 %v650, %v28
    %v725 = vrot.slane %v723, 6
    %v727 = vadd.f32 %v722, %v725
    %v728 = vmul.f32 %v694, %v28
    %v730 = vrot.slane %v728, 1
    %v732 = vadd.f32 %v727, %v730
    %v733 = vtanh.pop %v732
    %v735 = vrot.slane %v733, 7
    %v737 = vmul.f32 %v29, %v735
    %v738 = vadd.f32 %v737, %v109
    %v740 = vrot.slane %v738, 3
    %v742 = vsel %vm115, %v740, 0.0
    %743 = vadd.xlane.f32.xlu0 %v742
    %v744 = vpop.xlane.xlu0 %743
    %v745 = vrot.slane %v744, 4
    %v746 = vadd.f32 %v744, %v745
    %v747 = vrot.slane %v746, 2
    %v748 = vadd.f32 %v746, %v747
    %v749 = vrot.slane %v748, 1
    %v750 = vadd.f32 %v748, %v749
    %s751 = vtos %v750
    %v752 = vstv %s751
    %v753 = vrot.slane %v660, 3
    %v755 = vadd.f32 %v30, %v753
    %v756 = vrot.slane %v558, 4
    %v758 = vadd.f32 %v755, %v756
    %v759 = vrot.slane %v665, 7
    %v761 = vadd.f32 %v758, %v759
    %v762 = vmul.f32 %v650, %v29
    %v764 = vrot.slane %v762, 2
    %v766 = vadd.f32 %v761, %v764
    %v767 = vmul.f32 %v694, %v30
    %v769 = vrot.slane %v767, 6
    %v771 = vadd.f32 %v766, %v769
    %v772 = vmul.f32 %v752, %v30
    %v774 = vrot.slane %v772, 5
    %v776 = vadd.f32 %v771, %v774
    %v777 = vtanh.pop %v776
    %v779 = vrot.slane %v777, 7
    %v781 = vmul.f32 %v30, %v779
    %v782 = vadd.f32 %v781, %v168
    %v784 = vrot.slane %v782, 4
    %v786 = vsel %vm115, %v784, 0.0
    %787 = vadd.xlane.f32.xlu0 %v786
    %v788 = vpop.xlane.xlu0 %787
    %v789 = vrot.slane %v788, 4
    %v790 = vadd.f32 %v788, %v789
    %v791 = vrot.slane %v790, 2
    %v792 = vadd.f32 %v790, %v791
    %v793 = vrot.slane %v792, 1
    %v794 = vadd.f32 %v792, %v793
    %s795 = vtos %v794
    %v796 = vstv %s795
    %s797 = sld [smem:[#allocation2 + $0x6]]
    %v798 = vstv %s797
    %v799 = vmul.f32 %v798, %v28
    %v801 = vrot.slane %v799, 4
    %v803 = vadd.f32 %v29, %v801
    %v804 = vrot.slane %v697, 5
    %v806 = vadd.f32 %v803, %v804
    %v807 = vmul.f32 %v594, %v29
    %v809 = vrot.slane %v807, 6
    %v811 = vadd.f32 %v806, %v809
    %v812 = vrot.slane %v705, 7
    %v814 = vadd.f32 %v811, %v812
    %v815 = vrot.slane %v723, 7
    %v817 = vadd.f32 %v814, %v815
    %v818 = vadd.f32 %v817, %v621
    %v819 = vrot.slane %v728, 2
    %v821 = vadd.f32 %v818, %v819
    %v822 = vrot.slane %v626, 3
    %v824 = vadd.f32 %v821, %v822
    %v825 = vmul.f32 %v752, %v28
    %v827 = vrot.slane %v825, 6
    %v829 = vadd.f32 %v824, %v827
    %v830 = vmul.f32 %v796, %v28
    %v832 = vrot.slane %v830, 1
    %v834 = vadd.f32 %v829, %v832
    %v835 = vtanh.pop %v834
    %v837 = vrot.slane %v835, 7
    %v839 = vmul.f32 %v29, %v837
    %v840 = vadd.f32 %v839, %v109
    %v842 = vrot.slane %v840, 3
    %v844 = vsel %vm115, %v842, 0.0
    %845 = vadd.xlane.f32.xlu0 %v844
    %v846 = vpop.xlane.xlu0 %845
    %v847 = vrot.slane %v846, 4
    %v848 = vadd.f32 %v846, %v847
    %v849 = vrot.slane %v848, 2
    %v850 = vadd.f32 %v848, %v849
    %v851 = vrot.slane %v850, 1
    %v852 = vadd.f32 %v850, %v851
    %s853 = vtos %v852
    %v854 = vstv %s853
    %v855 = vrot.slane %v762, 3
    %v857 = vadd.f32 %v30, %v855
    %v858 = vrot.slane %v660, 4
    %v860 = vadd.f32 %v857, %v858
    %v861 = vrot.slane %v767, 7
    %v863 = vadd.f32 %v860, %v861
    %v864 = vmul.f32 %v752, %v29
    %v866 = vrot.slane %v864, 2
    %v868 = vadd.f32 %v863, %v866
    %v869 = vmul.f32 %v796, %v30
    %v871 = vrot.slane %v869, 6
    %v873 = vadd.f32 %v868, %v871
    %v874 = vmul.f32 %v854, %v30
    %v876 = vrot.slane %v874, 5
    %v878 = vadd.f32 %v873, %v876
    %v879 = vtanh.pop %v878
    %v881 = vrot.slane %v879, 7
    %v883 = vmul.f32 %v30, %v881
    %v884 = vadd.f32 %v883, %v168
    %v886 = vrot.slane %v884, 4
    %v888 = vsel %vm115, %v886, 0.0
    %889 = vadd.xlane.f32.xlu0 %v888
    %v890 = vpop.xlane.xlu0 %889
    %v891 = vrot.slane %v890, 4
    %v892 = vadd.f32 %v890, %v891
    %v893 = vrot.slane %v892, 2
    %v894 = vadd.f32 %v892, %v893
    %v895 = vrot.slane %v894, 1
    %v896 = vadd.f32 %v894, %v895
    %s897 = vtos %v896
    %s898 = scalar_lea.smem [#allocation6], 0
    %899 = sst [smem:[%s898]] %s183
    %s900 = scalar_lea.smem [#allocation6], 1
    %901 = sst [smem:[%s900]] %s285
    %s902 = scalar_lea.smem [#allocation6], 2
    %903 = sst [smem:[%s902]] %s387
    %s904 = scalar_lea.smem [#allocation6], 3
    %905 = sst [smem:[%s904]] %s489
    %s906 = scalar_lea.smem [#allocation6], 4
    %907 = sst [smem:[%s906]] %s591
    %s908 = scalar_lea.smem [#allocation6], 5
    %909 = sst [smem:[%s908]] %s693
    %s910 = scalar_lea.smem [#allocation6], 6
    %911 = sst [smem:[%s910]] %s795
    %s912 = scalar_lea.smem [#allocation6], 7
    %913 = sst [smem:[%s912]] %s897
    %s914 = scalar_lea.smem [#allocation7], 0
    %915 = sst [smem:[%s914]] %s853
    %s916 = scalar_lea.smem [#allocation7], 1
    %917 = sst [smem:[%s916]] %s751
    %s918 = scalar_lea.smem [#allocation7], 2
    %919 = sst [smem:[%s918]] %s649
    %s920 = sld [smem:[#allocation2 + $0x7]]
    %s921 = scalar_lea.smem [#allocation7], 3
    %922 = sst [smem:[%s921]] %s920
    %s923 = sld [smem:[#allocation2 + $0x6]]
    %s924 = scalar_lea.smem [#allocation7], 4
    %925 = sst [smem:[%s924]] %s923
    %s926 = sld [smem:[#allocation2 + $0x5]]
    %s927 = scalar_lea.smem [#allocation7], 5
    %928 = sst [smem:[%s927]] %s926
    %s929 = sld [smem:[#allocation2 + $0x4]]
    %s930 = scalar_lea.smem [#allocation7], 6
    %931 = sst [smem:[%s930]] %s929
    %s932 = scalar_lea.smem [#allocation7], 7
    %933 = sst [smem:[%s932]] %s897
    %s934 = scalar_lea.smem [#allocation7], 8
    %935 = sst [smem:[%s934]] %s795
    %s936 = scalar_lea.smem [#allocation7], 9
    %937 = sst [smem:[%s936]] %s693
    %s938 = scalar_lea.smem [#allocation7], 10
    %939 = sst [smem:[%s938]] %s853
    %s940 = scalar_lea.smem [#allocation7], 11
    %941 = sst [smem:[%s940]] %s751
    %s942 = scalar_lea.smem [#allocation7], 12
    %943 = sst [smem:[%s942]] %s649
    %s944 = scalar_lea.smem [#allocation7], 13
    %945 = sst [smem:[%s944]] %s897
    %s946 = scalar_lea.smem [#allocation7], 14
    %947 = sst [smem:[%s946]] %s795
    // Predicated region
    $region14: #{_lambda_.1} parent=1 // pred_check
      _
    $region15: #{_lambda_.1} parent=1 // pred_check_branch
      %949 = sbr.rel (0) target = $region17
    $region16: #{_lambda_.1} parent=1 // pred_region
      %s951 = ssub.s32 16, 16
      %952 = vsyncadd [#allocation3], %s951
      %955 = dma.smem_to_hbm [#allocation6], 16, %s2, [#allocation3]
    $region17: #{_lambda_.1} parent=1 // pred_fallthru
      _
    // Predicated region
    $region18: #{_lambda_.1} parent=1 // pred_check
      _
    $region19: #{_lambda_.1} parent=1 // pred_check_branch
      %957 = sbr.rel (0) target = $region21
    $region20: #{_lambda_.1} parent=1 // pred_region
      %s959 = ssub.s32 16, 16
      %960 = vsyncadd [#allocation5], %s959
      %s962 = sshll.u32 %s3, 4
      %s963 = int_to_ptr.vmem [resolvable:$true] %s962
      %965 = dma.smem_to_vmem [#allocation7], 16, %s963, [#allocation5]
    $region21: #{_lambda_.1} parent=1 // pred_fallthru
      _
    // Predicated region
    $region22: #{_lambda_.1} parent=1 // pred_check
      _
    $region23: #{_lambda_.1} parent=1 // pred_check_branch
      %967 = sbr.rel (0) target = $region25
    $region24: #{_lambda_.1} parent=1 // pred_region
      %968 = dma.done [#allocation3], 16
    $region25: #{_lambda_.1} parent=1 // pred_fallthru
      _
    // Predicated region
    $region26: #{_lambda_.1} parent=1 // pred_check
      _
    $region27: #{_lambda_.1} parent=1 // pred_check_branch
      %970 = sbr.rel (0) target = $region29
    $region28: #{_lambda_.1} parent=1 // pred_region
      %971 = dma.done [#allocation5], 16
    $region29: #{_lambda_.1} parent=1 // pred_fallthru
      _
    %972 = sfence
    %973 = vsyncpa [#allocation3], 1
    %974 = vsyncpa [#allocation4], 1
    %975 = vsyncpa [#allocation5], 1

</llo_original>
